<compile_context>
chip_gen: v7x
topology: tpu7x:2x2x1
jax: 0.10.0
libtpu: 0.0.40
codegen_flags: <defaults>
</compile_context>

<pallas_src>
import jax
import jax.numpy as jnp
from jax.experimental import pallas as pl
from jax.experimental.pallas import tpu as pltpu


def _round_up(x, m):
    return ((x + m - 1) // m) * m


# ----------------------------- linear kernel -------------------------------

def _linear_kernel(x_ref, wt_ref, b_ref, o_ref):
    # x: (tm, Din) f32, wt: (Din, Dout_pad) bf16 (pre-transposed), b: (1, Dout_pad) f32
    x = x_ref[...].astype(jnp.bfloat16)
    acc = jnp.dot(x, wt_ref[...], preferred_element_type=jnp.float32)
    o_ref[...] = (acc + b_ref[...]).astype(o_ref.dtype)


def _pick_tm(n_rows, din, dout_pad, tm_max=256, budget_bytes=24 * 1024 * 1024):
    # Double-buffered f32 x-tile + double-buffered f32 out-tile must sit well
    # inside the scoped-VMEM budget (v7x: 64 MiB physical / 32 MiB scoped).
    per_row = 2 * 4 * (din + dout_pad)
    tm = min(tm_max, max(8, budget_bytes // max(per_row, 1)))
    tm = max(8, (tm // 8) * 8)               # sublane multiple
    tm = min(tm, _round_up(n_rows, 8))       # never bigger than the input
    return tm


def pallas_linear(x, wt_bf16, b_pad, *, tm=None):
    """y = x @ wt + b, with wt already transposed/zero-padded to (Din, Dout_pad)."""
    n, din = x.shape
    din_w, dout_pad = wt_bf16.shape
    assert din_w == din and dout_pad % 128 == 0
    if tm is None:
        tm = _pick_tm(n, din, dout_pad)
    return pl.pallas_call(
        _linear_kernel,
        out_shape=jax.ShapeDtypeStruct((n, dout_pad), jnp.float32),
        grid=(pl.cdiv(n, tm),),
        in_specs=[
            pl.BlockSpec((tm, din), lambda i: (i, 0)),
            pl.BlockSpec((din, dout_pad), lambda i: (0, 0)),
            pl.BlockSpec((1, dout_pad), lambda i: (0, 0)),
        ],
        out_specs=pl.BlockSpec((tm, dout_pad), lambda i: (i, 0)),
        compiler_params=pltpu.CompilerParams(
            dimension_semantics=("parallel",),
            vmem_limit_bytes=32 * 1024 * 1024,
        ),
    )(x, wt_bf16, b_pad)


# ---------------------------- edge-dot kernel -------------------------------

def _edge_dot_kernel(hu_ref, hi_ref, o_ref):
    # hu, hi: (te, D) f32 -> o: (1, te) f32.
    # Transpose the product so the per-edge sums land lane-major and the
    # (1, te) output store is a dense, unmasked vst (no (te, 1) masked stores).
    prod = hu_ref[...] * hi_ref[...]
    o_ref[...] = jnp.sum(prod.T, axis=0, keepdims=True)


def pallas_edge_dot(hu_e, hi_e, *, te=512):
    e_pad, d = hu_e.shape
    te = min(te, e_pad)
    assert te % 128 == 0 and e_pad % te == 0
    return pl.pallas_call(
        _edge_dot_kernel,
        out_shape=jax.ShapeDtypeStruct((1, e_pad), jnp.float32),
        grid=(e_pad // te,),
        in_specs=[
            pl.BlockSpec((te, d), lambda i: (i, 0)),
            pl.BlockSpec((te, d), lambda i: (i, 0)),
        ],
        out_specs=pl.BlockSpec((1, te), lambda i: (0, i)),
        compiler_params=pltpu.CompilerParams(
            dimension_semantics=("parallel",),
            vmem_limit_bytes=32 * 1024 * 1024,
        ),
    )(hu_e, hi_e)


# ------------------------------ module glue --------------------------------

def prepare_params(params, lane_pad=128):
    """One-time hoist: transpose nn.Linear weights to (Din, Dout_pad), zero-pad
    Dout to a multiple of 128 (lane-dense), pre-cast weights to bf16."""
    def prep(w, b):
        dout, din = w.shape
        dp = _round_up(dout, lane_pad)
        wt = jnp.zeros((din, dp), jnp.float32).at[:, :dout].set(w.T)
        bp = jnp.zeros((1, dp), jnp.float32).at[0, :dout].set(b)
        return wt.astype(jnp.bfloat16), bp

    wu, bu = prep(params["W_u_w"], params["W_u_b"])
    wv, bv = prep(params["W_v_w"], params["W_v_b"])
    return {"Wt_u": wu, "b_u": bu, "Wt_v": wv, "b_v": bv}


def rating_prediction_forward(prepped, src, dst, ufeats, ifeats, *, te=512):
    """Pallas implementation of RatingPrediction.forward.

    src/dst are the edge endpoints of the bipartite user->item graph.
    Returns pred of shape (E, 1), matching dgl's u_dot_v output.
    """
    hu = pallas_linear(ufeats, prepped["Wt_u"], prepped["b_u"])
    hi = pallas_linear(ifeats, prepped["Wt_v"], prepped["b_v"])

    e = src.shape[0]
    te_eff = min(te, _round_up(e, 128))
    e_pad = _round_up(e, te_eff)
    # Edge gather stays in XLA; padded edges reuse row 0 and are sliced off.
    # TODO(synk): fuse the gather into the edge-dot kernel (scalar-prefetch /
    # manual per-row DMA gather) to avoid materialising (E, D) hu_e / hi_e.
    src_p = jnp.pad(src, (0, e_pad - e))
    dst_p = jnp.pad(dst, (0, e_pad - e))
    hu_e = jnp.take(hu, src_p, axis=0)
    hi_e = jnp.take(hi, dst_p, axis=0)

    pred = pallas_edge_dot(hu_e, hi_e, te=te_eff)      # (1, E_pad) lane-dense
    return pred[0, :e, None]                           # (E, 1)


def init_params(key, in_feats_dim, out_feats_dim=64, dtype=jnp.float32):
    k1, k2, k3, k4 = jax.random.split(key, 4)
    # xavier_normal_: std = sqrt(2 / (fan_in + fan_out)); weights are (out, in).
    std = (2.0 / (in_feats_dim + out_feats_dim)) ** 0.5
    # nn.Linear default bias init: U(-1/sqrt(fan_in), 1/sqrt(fan_in)).
    bound = 1.0 / (in_feats_dim ** 0.5)
    return {
        "W_u_w": std * jax.random.normal(k1, (out_feats_dim, in_feats_dim), dtype),
        "W_v_w": std * jax.random.normal(k2, (out_feats_dim, in_feats_dim), dtype),
        "W_u_b": jax.random.uniform(k3, (out_feats_dim,), dtype, -bound, bound),
        "W_v_b": jax.random.uniform(k4, (out_feats_dim,), dtype, -bound, bound),
    }


if __name__ == "__main__":
    in_feats_dim = 96
    out_feats_dim = 64
    num_users = 520       # -> 3 linear row-blocks of 256 (last one partial)
    num_items = 384       # -> 2 linear row-blocks
    num_edges = 1000      # -> padded to 1024, 2 edge-dot blocks of 512

    key = jax.random.PRNGKey(0)
    kp, ku, ki, ks, kd = jax.random.split(key, 5)

    params = init_params(kp, in_feats_dim, out_feats_dim)
    ufeats = jax.random.normal(ku, (num_users, in_feats_dim), jnp.float32)
    ifeats = jax.random.normal(ki, (num_items, in_feats_dim), jnp.float32)
    src = jax.random.randint(ks, (num_edges,), 0, num_users)
    dst = jax.random.randint(kd, (num_edges,), 0, num_items)

    prepped = prepare_params(params)
    fwd = jax.jit(rating_prediction_forward)
    pred = jax.block_until_ready(fwd(prepped, src, dst, ufeats, ifeats))
    assert pred.shape == (num_edges, 1)

    # Reference emulating the kernel's bf16 matmul inputs (f32 accumulation).
    def r16(x):
        return x.astype(jnp.bfloat16).astype(jnp.float32)

    hu_r = r16(ufeats) @ r16(params["W_u_w"]).T + params["W_u_b"]
    hi_r = r16(ifeats) @ r16(params["W_v_w"]).T + params["W_v_b"]
    pred_r = jnp.sum(hu_r[src] * hi_r[dst], axis=-1, keepdims=True)
    assert jnp.allclose(pred, pred_r, atol=1e-3, rtol=1e-3), float(
        jnp.max(jnp.abs(pred - pred_r)))

    # Loose sanity check against full-f32 math (difference = bf16 input rounding).
    hu_f = ufeats @ params["W_u_w"].T + params["W_u_b"]
    hi_f = ifeats @ params["W_v_w"].T + params["W_v_b"]
    pred_f = jnp.sum(hu_f[src] * hi_f[dst], axis=-1, keepdims=True)
    assert jnp.allclose(pred, pred_f, atol=0.5, rtol=0.05)

    print("KERNEL_OK")
</pallas_src>

<mosaic_0001>
module attributes {stable_mosaic.version = 11 : i64} {
  func.func @_linear_kernel(%arg0: i32, %arg1: memref<256x96xf32, #tpu.memory_space<vmem>>, %arg2: memref<96x128xbf16, #tpu.memory_space<vmem>>, %arg3: memref<1x128xf32, #tpu.memory_space<vmem>>, %arg4: memref<256x128xf32, #tpu.memory_space<vmem>>) attributes {dimension_semantics = [#tpu.dimension_semantics<parallel>], iteration_bounds = array<i64: 3>, scalar_prefetch = 0 : i64, scratch_operands = 0 : i64, tpu.core_type = #tpu.core_type<tc>, window_params = [{transform_indices = @transform_0, window_bounds = array<i64: 256, 96>}, {pipeline_mode = #tpu.pipeline_mode<synchronous>, transform_indices = @transform_1, window_bounds = array<i64: 96, 128>}, {pipeline_mode = #tpu.pipeline_mode<synchronous>, transform_indices = @transform_2, window_bounds = array<i64: 1, 128>}, {transform_indices = @transform_3, window_bounds = array<i64: 256, 128>}]} {
    %c0 = arith.constant 0 : index
    %c0_0 = arith.constant 0 : index
    %0 = vector.load %arg1[%c0, %c0_0] : memref<256x96xf32, #tpu.memory_space<vmem>>, vector<256x96xf32>
    %1 = arith.truncf %0 : vector<256x96xf32> to vector<256x96xbf16>
    %c0_1 = arith.constant 0 : index
    %c0_2 = arith.constant 0 : index
    %2 = vector.load %arg2[%c0_1, %c0_2] : memref<96x128xbf16, #tpu.memory_space<vmem>>, vector<96x128xbf16>
    %cst = arith.constant dense<0.000000e+00> : vector<256x128xf32>
    %3 = tpu.matmul %1, %2, %cst {dimension_numbers = #tpu.dot_dimension_numbers<[1], [0], [0], [1], [0, 0, 1, 1], [], []>} : vector<256x96xbf16>, vector<96x128xbf16>, vector<256x128xf32> -> vector<256x128xf32>
    %c0_3 = arith.constant 0 : index
    %c0_4 = arith.constant 0 : index
    %4 = vector.load %arg3[%c0_3, %c0_4] : memref<1x128xf32, #tpu.memory_space<vmem>>, vector<1x128xf32>
    %5 = vector.broadcast %4 : vector<1x128xf32> to vector<256x128xf32>
    %6 = arith.addf %3, %5 : vector<256x128xf32>
    %c0_5 = arith.constant 0 : index
    %c0_6 = arith.constant 0 : index
    %7 = vector.load %arg4[%c0_5, %c0_6] : memref<256x128xf32, #tpu.memory_space<vmem>>, vector<256x128xf32>
    tpu.vector_store %arg4[%c0_5, %c0_6], %6 {strides = array<i32>} : memref<256x128xf32, #tpu.memory_space<vmem>>, vector<256x128xf32>,
    return
  }
  func.func @transform_0(%arg0: i32) -> (i32, i32) {
    %c0_i32 = arith.constant 0 : i32
    %c0_i32_0 = arith.constant 0 : i32
    return %arg0, %c0_i32 : i32, i32
  }
  func.func @transform_1(%arg0: i32) -> (i32, i32) {
    %c0_i32 = arith.constant 0 : i32
    %c0_i32_0 = arith.constant 0 : i32
    %c0_i32_1 = arith.constant 0 : i32
    return %c0_i32, %c0_i32_0 : i32, i32
  }
  func.func @transform_2(%arg0: i32) -> (i32, i32) {
    %c0_i32 = arith.constant 0 : i32
    %c0_i32_0 = arith.constant 0 : i32
    %c0_i32_1 = arith.constant 0 : i32
    return %c0_i32, %c0_i32_0 : i32, i32
  }
  func.func @transform_3(%arg0: i32) -> (i32, i32) {
    %c0_i32 = arith.constant 0 : i32
    %c0_i32_0 = arith.constant 0 : i32
    return %arg0, %c0_i32 : i32, i32
  }
}

module attributes {stable_mosaic.version = 11 : i64} {
  func.func @_linear_kernel(%arg0: i32, %arg1: memref<256x96xf32, #tpu.memory_space<vmem>>, %arg2: memref<96x128xbf16, #tpu.memory_space<vmem>>, %arg3: memref<1x128xf32, #tpu.memory_space<vmem>>, %arg4: memref<256x128xf32, #tpu.memory_space<vmem>>) attributes {dimension_semantics = [#tpu.dimension_semantics<parallel>], iteration_bounds = array<i64: 2>, scalar_prefetch = 0 : i64, scratch_operands = 0 : i64, tpu.core_type = #tpu.core_type<tc>, window_params = [{transform_indices = @transform_0, window_bounds = array<i64: 256, 96>}, {pipeline_mode = #tpu.pipeline_mode<synchronous>, transform_indices = @transform_1, window_bounds = array<i64: 96, 128>}, {pipeline_mode = #tpu.pipeline_mode<synchronous>, transform_indices = @transform_2, window_bounds = array<i64: 1, 128>}, {transform_indices = @transform_3, window_bounds = array<i64: 256, 128>}]} {
    %c0 = arith.constant 0 : index
    %c0_0 = arith.constant 0 : index
    %0 = vector.load %arg1[%c0, %c0_0] : memref<256x96xf32, #tpu.memory_space<vmem>>, vector<256x96xf32>
    %1 = arith.truncf %0 : vector<256x96xf32> to vector<256x96xbf16>
    %c0_1 = arith.constant 0 : index
    %c0_2 = arith.constant 0 : index
    %2 = vector.load %arg2[%c0_1, %c0_2] : memref<96x128xbf16, #tpu.memory_space<vmem>>, vector<96x128xbf16>
    %cst = arith.constant dense<0.000000e+00> : vector<256x128xf32>
    %3 = tpu.matmul %1, %2, %cst {dimension_numbers = #tpu.dot_dimension_numbers<[1], [0], [0], [1], [0, 0, 1, 1], [], []>} : vector<256x96xbf16>, vector<96x128xbf16>, vector<256x128xf32> -> vector<256x128xf32>
    %c0_3 = arith.constant 0 : index
    %c0_4 = arith.constant 0 : index
    %4 = vector.load %arg3[%c0_3, %c0_4] : memref<1x128xf32, #tpu.memory_space<vmem>>, vector<1x128xf32>
    %5 = vector.broadcast %4 : vector<1x128xf32> to vector<256x128xf32>
    %6 = arith.addf %3, %5 : vector<256x128xf32>
    %c0_5 = arith.constant 0 : index
    %c0_6 = arith.constant 0 : index
    %7 = vector.load %arg4[%c0_5, %c0_6] : memref<256x128xf32, #tpu.memory_space<vmem>>, vector<256x128xf32>
    tpu.vector_store %arg4[%c0_5, %c0_6], %6 {strides = array<i32>} : memref<256x128xf32, #tpu.memory_space<vmem>>, vector<256x128xf32>,
    return
  }
  func.func @transform_0(%arg0: i32) -> (i32, i32) {
    %c0_i32 = arith.constant 0 : i32
    %c0_i32_0 = arith.constant 0 : i32
    return %arg0, %c0_i32 : i32, i32
  }
  func.func @transform_1(%arg0: i32) -> (i32, i32) {
    %c0_i32 = arith.constant 0 : i32
    %c0_i32_0 = arith.constant 0 : i32
    %c0_i32_1 = arith.constant 0 : i32
    return %c0_i32, %c0_i32_0 : i32, i32
  }
  func.func @transform_2(%arg0: i32) -> (i32, i32) {
    %c0_i32 = arith.constant 0 : i32
    %c0_i32_0 = arith.constant 0 : i32
    %c0_i32_1 = arith.constant 0 : i32
    return %c0_i32, %c0_i32_0 : i32, i32
  }
  func.func @transform_3(%arg0: i32) -> (i32, i32) {
    %c0_i32 = arith.constant 0 : i32
    %c0_i32_0 = arith.constant 0 : i32
    return %arg0, %c0_i32 : i32, i32
  }
}

module attributes {stable_mosaic.version = 11 : i64} {
  func.func @_edge_dot_kernel(%arg0: i32, %arg1: memref<512x128xf32, #tpu.memory_space<vmem>>, %arg2: memref<512x128xf32, #tpu.memory_space<vmem>>, %arg3: memref<1x512xf32, #tpu.memory_space<vmem>>) attributes {dimension_semantics = [#tpu.dimension_semantics<parallel>], iteration_bounds = array<i64: 2>, scalar_prefetch = 0 : i64, scratch_operands = 0 : i64, tpu.core_type = #tpu.core_type<tc>, window_params = [{transform_indices = @transform_0, window_bounds = array<i64: 512, 128>}, {transform_indices = @transform_1, window_bounds = array<i64: 512, 128>}, {transform_indices = @transform_2, window_bounds = array<i64: 1, 512>}]} {
    %c0 = arith.constant 0 : index
    %c0_0 = arith.constant 0 : index
    %0 = vector.load %arg1[%c0, %c0_0] : memref<512x128xf32, #tpu.memory_space<vmem>>, vector<512x128xf32>
    %c0_1 = arith.constant 0 : index
    %c0_2 = arith.constant 0 : index
    %1 = vector.load %arg2[%c0_1, %c0_2] : memref<512x128xf32, #tpu.memory_space<vmem>>, vector<512x128xf32>
    %2 = arith.mulf %0, %1 : vector<512x128xf32>
    %3 = tpu.transpose %2, [1, 0] : vector<512x128xf32> -> vector<128x512xf32>
    %cst = arith.constant dense<0.000000e+00> : vector<512xf32>
    %4 = vector.multi_reduction <add>, %3, %cst [0] : vector<128x512xf32> to vector<512xf32>
    %5 = vector.shape_cast %4 : vector<512xf32> to vector<1x512xf32>
    %c0_3 = arith.constant 0 : index
    %c0_4 = arith.constant 0 : index
    %6 = vector.load %arg3[%c0_3, %c0_4] : memref<1x512xf32, #tpu.memory_space<vmem>>, vector<1x512xf32>
    tpu.vector_store %arg3[%c0_3, %c0_4], %5 {strides = array<i32>} : memref<1x512xf32, #tpu.memory_space<vmem>>, vector<1x512xf32>,
    return
  }
  func.func @transform_0(%arg0: i32) -> (i32, i32) {
    %c0_i32 = arith.constant 0 : i32
    %c0_i32_0 = arith.constant 0 : i32
    return %arg0, %c0_i32 : i32, i32
  }
  func.func @transform_1(%arg0: i32) -> (i32, i32) {
    %c0_i32 = arith.constant 0 : i32
    %c0_i32_0 = arith.constant 0 : i32
    return %arg0, %c0_i32 : i32, i32
  }
  func.func @transform_2(%arg0: i32) -> (i32, i32) {
    %c0_i32 = arith.constant 0 : i32
    %c0_i32_0 = arith.constant 0 : i32
    return %c0_i32, %arg0 : i32, i32
  }
}

</mosaic_0001>

<llo_original>
// kernel: rating_prediction_forward.3
$region0: #{rating_prediction_forward.3}
  #allocation0 [shape = 'u32[]', space=smem, size = 0x4, offset = 0x4, fixed_abs, tag = 'smem constant byte address 0x4 - core index']
  #allocation1 [shape = 'u32[144,128]{1,0:T(1,128)}', space=vmem, size = 0x12000, scoped, tag = 'internal scratch']
  %s0 = inlined_call_operand.vmem [shape: f32[520,96], index: 0, kind: input, shape index: {}]
  %s1 = inlined_call_operand.vmem [shape: bf16[96,128], index: 1, kind: input, shape index: {}]
  %s2 = inlined_call_operand.vmem [shape: f32[1,128], index: 2, kind: input, shape index: {}]
  %s3 = inlined_call_operand.vmem [shape: f32[520,128], index: 3, kind: output, shape index: {}]
  %s4 = sld [smem:[#allocation0]]
  $region93: #{rating_prediction_forward.3} parent=0
    _
  %s6 = ssub.s32 1, %s4
  %s7 = scalar_select 0, %s6, %s4
  $region1: #{rating_prediction_forward.3} parent=0
    #allocation2 [shape = 'u8[262144]{0}', space=vmem, size = 0x40000, scoped, tag = 'output window, operand 0']
    loop: start=0, step=1, limit=5
    $region2: #{rating_prediction_forward.3} parent=1 // loop_pre_header
      _
    $region3: #{rating_prediction_forward.3} parent=1 // loop_header
      %s9 = sphi 0, %s13
      %p10 = scmp.ge.s32.totalorder %s9, 5
      %s19 = sphi 0, %s21
      %s22 = sphi 0, %s19
      %s23 = sphi 0, %s22
      %s39 = sphi 0, %s23
      %s43 = sphi 0, %s43
      %s45 = sphi 0, %s43
      %s46 = sphi 0, %s45
      %s60 = sphi 0, %s46
      %s64 = sphi 0, %s64
      %s66 = sphi 0, %s64
      %s67 = sphi 0, %s66
      %s81 = sphi 0, %s67
      %s87 = sphi 0, %s89
      %s90 = sphi 0, %s87
      %s91 = sphi 0, %s90
      %s107 = sphi 0, %s91
    $region4: #{rating_prediction_forward.3} parent=1 // loop_header_branch
      %12 = sbr.rel (%p10) target = $region8
    $region5: #{rating_prediction_forward.3} parent=1 // loop_body
      %s14 = ssub.s32 %s9, 1
      %s15 = ssub.s32 %s9, 2
      %s16 = sadd.s32 %s9, 1
      %s17 = ssub.s32 %s9, %s16
      %p18 = scmp.eq.s32.totalorder %s17, 0
      %s20 = sadd.s32 %s19, 1
      %s21 = scalar_select %p18, %s19, %s20
      %p24 = pneg %p18
      %p25 = scmp.eq.s32.totalorder %s9, 2
      %p26 = por %p24, %p25
      %p27 = scmp.ne.s32.totalorder %s19, %s22
      %p28 = scmp.eq.s32.totalorder %s9, 0
      %p29 = por %p27, %p28
      %p30 = scmp.ne.s32.totalorder %s19, %s22
      %p31 = scmp.eq.s32.totalorder %s14, 2
      %p32 = por %p30, %p31
      %p33 = scmp.ne.s32.totalorder %s22, %s23
      %p34 = scmp.eq.s32.totalorder %s14, 0
      %p35 = por %p33, %p34
      %p36 = scmp.ne.s32.totalorder %s22, %s23
      %p37 = scmp.eq.s32.totalorder %s15, 2
      %p38 = por %p36, %p37
      %p40 = scmp.ne.s32.totalorder %s23, %s39
      %p41 = scmp.eq.s32.totalorder %s15, 0
      %p42 = por %p40, %p41
      %s44 = sadd.s32 %s43, 1
      %p47 = scmp.eq.s32.totalorder %s9, 2
      %p48 = scmp.ne.s32.totalorder %s43, %s45
      %p49 = scmp.eq.s32.totalorder %s9, 0
      %p50 = por %p48, %p49
      %p51 = scmp.ne.s32.totalorder %s43, %s45
      %p52 = scmp.eq.s32.totalorder %s14, 2
      %p53 = por %p51, %p52
      %p54 = scmp.ne.s32.totalorder %s45, %s46
      %p55 = scmp.eq.s32.totalorder %s14, 0
      %p56 = por %p54, %p55
      %p57 = scmp.ne.s32.totalorder %s45, %s46
      %p58 = scmp.eq.s32.totalorder %s15, 2
      %p59 = por %p57, %p58
      %p61 = scmp.ne.s32.totalorder %s46, %s60
      %p62 = scmp.eq.s32.totalorder %s15, 0
      %p63 = por %p61, %p62
      %s65 = sadd.s32 %s64, 1
      %p68 = scmp.eq.s32.totalorder %s9, 2
      %p69 = scmp.ne.s32.totalorder %s64, %s66
      %p70 = scmp.eq.s32.totalorder %s9, 0
      %p71 = por %p69, %p70
      %p72 = scmp.ne.s32.totalorder %s64, %s66
      %p73 = scmp.eq.s32.totalorder %s14, 2
      %p74 = por %p72, %p73
      %p75 = scmp.ne.s32.totalorder %s66, %s67
      %p76 = scmp.eq.s32.totalorder %s14, 0
      %p77 = por %p75, %p76
      %p78 = scmp.ne.s32.totalorder %s66, %s67
      %p79 = scmp.eq.s32.totalorder %s15, 2
      %p80 = por %p78, %p79
      %p82 = scmp.ne.s32.totalorder %s67, %s81
      %p83 = scmp.eq.s32.totalorder %s15, 0
      %p84 = por %p82, %p83
      %s85 = ssub.s32 %s9, %s16
      %p86 = scmp.eq.s32.totalorder %s85, 0
      %s88 = sadd.s32 %s87, 1
      %s89 = scalar_select %p86, %s87, %s88
      %p92 = pneg %p86
      %p93 = scmp.eq.s32.totalorder %s9, 2
      %p94 = por %p92, %p93
      %p95 = scmp.ne.s32.totalorder %s87, %s90
      %p96 = scmp.eq.s32.totalorder %s9, 0
      %p97 = por %p95, %p96
      %p98 = scmp.ne.s32.totalorder %s87, %s90
      %p99 = scmp.eq.s32.totalorder %s14, 2
      %p100 = por %p98, %p99
      %p101 = scmp.ne.s32.totalorder %s90, %s91
      %p102 = scmp.eq.s32.totalorder %s14, 0
      %p103 = por %p101, %p102
      %p104 = scmp.ne.s32.totalorder %s90, %s91
      %p105 = scmp.eq.s32.totalorder %s15, 2
      %p106 = por %p104, %p105
      %p108 = scmp.ne.s32.totalorder %s91, %s107
      %p109 = scmp.eq.s32.totalorder %s15, 0
      %p110 = por %p108, %p109
      %p111 = scmp.le.s32.totalorder 1, %s9
      %p112 = scmp.lt.s32.totalorder %s9, 4
      %p113 = pnand %p111, %p112
      %p114 = pneg %p113
      // Predicated region
      $region9: #{rating_prediction_forward.3} parent=5 // pred_check
        _
      $region10: #{rating_prediction_forward.3} parent=5 // pred_check_branch
        %116 = sbr.rel (%p113) target = $region12
      $region11: #{rating_prediction_forward.3} parent=5 // pred_region
        %s117 = ssub.s32 %s9, 1
        // Predicated region
        $region13: #{rating_prediction_forward.3} parent=11 // pred_check
          %p118 = pneg %p56
        $region14: #{rating_prediction_forward.3} parent=11 // pred_check_branch
          %120 = sbr.rel (%p118) target = $region16
        $region15: #{rating_prediction_forward.3} parent=11 // pred_region
          _
        $region16: #{rating_prediction_forward.3} parent=11 // pred_fallthru
          _
        // Predicated region
        $region17: #{rating_prediction_forward.3} parent=11 // pred_check
          %p121 = pneg %p77
        $region18: #{rating_prediction_forward.3} parent=11 // pred_check_branch
          %123 = sbr.rel (%p121) target = $region20
        $region19: #{rating_prediction_forward.3} parent=11 // pred_region
          _
        $region20: #{rating_prediction_forward.3} parent=11 // pred_fallthru
          _
      $region12: #{rating_prediction_forward.3} parent=5 // pred_fallthru
        _
      %p124 = scmp.lt.s32.totalorder %s9, 3
      // Predicated region
      $region21: #{rating_prediction_forward.3} parent=5 // pred_check
        %p125 = pneg %p124
      $region22: #{rating_prediction_forward.3} parent=5 // pred_check_branch
        %127 = sbr.rel (%p125) target = $region24
      $region23: #{rating_prediction_forward.3} parent=5 // pred_region
        // Predicated region
        $region25: #{rating_prediction_forward.3} parent=23 // pred_check
          %p128 = pneg %p29
        $region26: #{rating_prediction_forward.3} parent=23 // pred_check_branch
          %130 = sbr.rel (%p128) target = $region28
        $region27: #{rating_prediction_forward.3} parent=23 // pred_region
          %s131 = smul.u32 32, %s9
          %s132 = ssub.s32 65, %s131
          %p133 = scmp.lt.s32.totalorder %s132, 32
          %s134 = scalar_select %p133, %s132, 32
          %s135 = smul.u32 128, %s134
          %p136 = scmp.lt.s32.totalorder %s131, 64
          %s137 = scalar_select %p136, %s131, 64
          %s138 = smul.addr %s137, 8
          %s139 = scalar_lea.vmem %s0, %s138
          %s140 = smul.u32 32, %s9
          %s141 = ssub.s32 65, %s140
          %p142 = scmp.lt.s32.totalorder %s141, 32
          %s143 = scalar_select %p142, %s141, 32
          %s144 = smul.u32 128, %s143
        $region28: #{rating_prediction_forward.3} parent=23 // pred_fallthru
          _
      $region24: #{rating_prediction_forward.3} parent=5 // pred_fallthru
        _
      %p145 = scmp.le.s32.totalorder 1, %s9
      %p146 = scmp.lt.s32.totalorder %s9, 4
      %p147 = pnand %p145, %p146
      %p148 = pneg %p147
      // Predicated region
      $region29: #{rating_prediction_forward.3} parent=5 // pred_check
        _
      $region30: #{rating_prediction_forward.3} parent=5 // pred_check_branch
        %150 = sbr.rel (%p147) target = $region32
      $region31: #{rating_prediction_forward.3} parent=5 // pred_region
        %s151 = ssub.s32 %s9, 1
        %s152 = smul.u32 32, %s14
        %s153 = ssub.s32 65, %s152
        %p154 = scmp.lt.s32.totalorder %s153, 32
        %s155 = scalar_select %p154, %s153, 32
        %s156 = smul.u32 128, %s155
        %p157 = scmp.lt.s32.totalorder %s152, 64
        %s158 = scalar_select %p157, %s152, 64
        %s159 = smul.addr %s158, 8
        %s160 = scalar_lea.vmem %s0, %s159
        %p161 = pneg %p35
        %p162 = pneg %p32
        %p163 = pneg %p56
        %p164 = pneg %p53
        %p165 = pneg %p77
        %p166 = pneg %p74
        %p167 = pneg %p103
        %p168 = pneg %p100
        %s169 = sand.u32 %s90, 1
        %s170 = sand.u32 %s90, 1
        %s171 = smul.addr %s170, 256
        %s172 = scalar_lea.vmem [#allocation2], %s171
        %s173 = smul.u32 32, %s14
        %s174 = ssub.s32 65, %s173
        %p175 = scmp.lt.s32.totalorder %s174, 32
        %s176 = scalar_select %p175, %s174, 32
        %s177 = smul.u32 128, %s176
        %p178 = scmp.lt.s32.totalorder %s173, 64
        %s179 = scalar_select %p178, %s173, 64
        %s180 = smul.addr %s179, 8
        %s181 = scalar_lea.vmem %s0, %s180
        %s182 = smul.u32 32, %s14
        %s183 = ssub.s32 65, %s182
        %p184 = scmp.lt.s32.totalorder %s183, 32
        %s185 = scalar_select %p184, %s183, 32
        %s186 = smul.u32 128, %s185
        %s187 = smul.u32 32, %s14
        %s188 = ssub.s32 65, %s187
        %p189 = scmp.lt.s32.totalorder %s188, 32
        %s190 = scalar_select %p189, %s188, 32
        %s191 = smul.u32 128, %s190
        %v193 = vld [vmem:[%s181] sm:$0xff]
        %v194 = vld [vmem:[%s181 + $0x8] sm:$0xff]
        %v195 = vld [vmem:[%s181 + $0x10] sm:$0xff]
        %v196 = vld [vmem:[%s181 + $0x18] sm:$0xff]
        %v197 = vld [vmem:[%s181 + $0x20] sm:$0xff]
        %v198 = vld [vmem:[%s181 + $0x28] sm:$0xff]
        %v199 = vld [vmem:[%s181 + $0x30] sm:$0xff]
        %v200 = vld [vmem:[%s181 + $0x38] sm:$0xff]
        %v201 = vld [vmem:[%s181 + $0x40] sm:$0xff]
        %v202 = vld [vmem:[%s181 + $0x48] sm:$0xff]
        %v203 = vld [vmem:[%s181 + $0x50] sm:$0xff]
        %v204 = vld [vmem:[%s181 + $0x58] sm:$0xff]
        %v205 = vld [vmem:[%s181 + $0x60] sm:$0xff]
        %v206 = vld [vmem:[%s181 + $0x68] sm:$0xff]
        %v207 = vld [vmem:[%s181 + $0x70] sm:$0xff]
        %v208 = vld [vmem:[%s181 + $0x78] sm:$0xff]
        %v209 = vld [vmem:[%s181 + $0x80] sm:$0xff]
        %v210 = vld [vmem:[%s181 + $0x88] sm:$0xff]
        %v211 = vld [vmem:[%s181 + $0x90] sm:$0xff]
        %v212 = vld [vmem:[%s181 + $0x98] sm:$0xff]
        %v213 = vld [vmem:[%s181 + $0xa0] sm:$0xff]
        %v214 = vld [vmem:[%s181 + $0xa8] sm:$0xff]
        %v215 = vld [vmem:[%s181 + $0xb0] sm:$0xff]
        %v216 = vld [vmem:[%s181 + $0xb8] sm:$0xff]
        %v217 = vld [vmem:[%s181 + $0xc0] sm:$0xff]
        %v218 = vld [vmem:[%s181 + $0xc8] sm:$0xff]
        %v219 = vld [vmem:[%s181 + $0xd0] sm:$0xff]
        %v220 = vld [vmem:[%s181 + $0xd8] sm:$0xff]
        %v221 = vld [vmem:[%s181 + $0xe0] sm:$0xff]
        %v222 = vld [vmem:[%s181 + $0xe8] sm:$0xff]
        %v223 = vld [vmem:[%s181 + $0xf0] sm:$0xff]
        %v224 = vld [vmem:[%s181 + $0xf8] sm:$0xff]
        %v225 = vpack.c.bf16 %v194, %v193
        %v226 = vpack.c.bf16 %v196, %v195
        %v227 = vpack.c.bf16 %v198, %v197
        %v228 = vpack.c.bf16 %v200, %v199
        %v229 = vpack.c.bf16 %v202, %v201
        %v230 = vpack.c.bf16 %v204, %v203
        %v231 = vpack.c.bf16 %v206, %v205
        %v232 = vpack.c.bf16 %v208, %v207
        %v233 = vpack.c.bf16 %v210, %v209
        %v234 = vpack.c.bf16 %v212, %v211
        %v235 = vpack.c.bf16 %v214, %v213
        %v236 = vpack.c.bf16 %v216, %v215
        %v237 = vpack.c.bf16 %v218, %v217
        %v238 = vpack.c.bf16 %v220, %v219
        %v239 = vpack.c.bf16 %v222, %v221
        %v240 = vpack.c.bf16 %v224, %v223
        %v241 = vld [vmem:[%s1] sm:$0xf]
        %v242 = vld [vmem:[%s1 + $0x4] sm:$0xf]
        %v243 = vld [vmem:[%s1 + $0x8] sm:$0xf]
        %v244 = vld [vmem:[%s1 + $0xc] sm:$0xf]
        %v245 = vld [vmem:[%s1 + $0x10] sm:$0xf]
        %v246 = vld [vmem:[%s1 + $0x14] sm:$0xf]
        %v247 = vld [vmem:[%s1 + $0x18] sm:$0xf]
        %v248 = vld [vmem:[%s1 + $0x1c] sm:$0xf]
        %v249 = vld [vmem:[%s1 + $0x20] sm:$0xf]
        %v250 = vld [vmem:[%s1 + $0x24] sm:$0xf]
        %v251 = vld [vmem:[%s1 + $0x28] sm:$0xf]
        %v252 = vld [vmem:[%s1 + $0x2c] sm:$0xf]
        %v253 = vld [vmem:[%s2] sm:$0x1]
        %v255 = vlaneseq
        %v256 = vshrl.u32 %v255, 7
        %v257 = vsub.s32 0, %v256
        %v258 = vrot.slane %v253, %v257
        %v272 = vunpack.c.l.b16 %v241
        %v273 = vunpack.c.l.b16 %v242
        %v274 = vunpack.c.l.b16 %v243
        %v275 = vunpack.c.l.b16 %v244
        %v276 = vunpack.c.l.b16 %v245
        %v277 = vunpack.c.l.b16 %v246
        %v278 = vunpack.c.l.b16 %v247
        %v279 = vunpack.c.l.b16 %v248
        %v280 = vunpack.c.l.b16 %v249
        %v281 = vunpack.c.l.b16 %v250
        %v282 = vunpack.c.l.b16 %v251
        %v283 = vunpack.c.l.b16 %v252
        %v284 = vpack.c.b16 %v273, %v272
        %v285 = vpack.c.b16 %v275, %v274
        %v286 = vpack.c.b16 %v277, %v276
        %v287 = vpack.c.b16 %v279, %v278
        %v288 = vpack.c.b16 %v281, %v280
        %v289 = vpack.c.b16 %v283, %v282
        %vm296 = vcmask 785408
        %v298 = vsel %vm296, %v225, 0
        %v301 = vsel %vm296, %v226, 0
        %v304 = vsel %vm296, %v227, 0
        %v307 = vsel %vm296, %v228, 0
        %v310 = vsel %vm296, %v229, 0
        %v313 = vsel %vm296, %v230, 0
        %v316 = vsel %vm296, %v231, 0
        %v319 = vsel %vm296, %v232, 0
        %v322 = vsel %vm296, %v233, 0
        %v325 = vsel %vm296, %v234, 0
        %v328 = vsel %vm296, %v235, 0
        %v331 = vsel %vm296, %v236, 0
        %v334 = vsel %vm296, %v237, 0
        %v337 = vsel %vm296, %v238, 0
        %v340 = vsel %vm296, %v239, 0
        %v343 = vsel %vm296, %v240, 0
        %345 = vmatprep.subr.bf16.mxu0 0
        %346 = vmatpush1.bf16.msra.mxu0 %v284
        %347 = vmatprep.subr.bf16.mxu0 0
        %348 = vmatpush1.bf16.msra.mxu0 %v285
        %349 = vmatprep.subr.bf16.mxu0 0
        %350 = vmatpush1.bf16.msra.mxu0 %v286
        %351 = vmatprep.subr.bf16.mxu0 0
        %352 = vmatpush1.bf16.msra.mxu0 %v287
        %353 = vmatprep.subr.bf16.mxu0 0
        %354 = vmatpush1.bf16.msra.mxu0 %v288
        %355 = vmatprep.subr.bf16.mxu0 0
        %356 = vmatpush1.bf16.msra.mxu0 %v289
        %357 = vmatprep.subr.bf16.mxu0 0
        %358 = vmatpush1.bf16.msra.mxu0 0
        %359 = vmatprep.subr.bf16.mxu0 0
        %360 = vmatpush1.bf16.msra.mxu0 0
        %361 = vmatprep.subr.bf16.mxu0 0
        %362 = vmatpush1.bf16.msra.mxu0 0
        %363 = vmatprep.subr.bf16.mxu0 0
        %364 = vmatpush1.bf16.msra.mxu0 0
        %365 = vmatprep.subr.bf16.mxu0 0
        %366 = vmatpush1.bf16.msra.mxu0 0
        %367 = vmatprep.subr.bf16.mxu0 0
        %368 = vmatpush1.bf16.msra.mxu0 0
        %369 = vmatprep.subr.bf16.mxu0 0
        %370 = vmatpush1.bf16.msra.mxu0 0
        %371 = vmatprep.subr.bf16.mxu0 0
        %372 = vmatpush1.bf16.msra.mxu0 0
        %373 = vmatprep.subr.bf16.mxu0 0
        %374 = vmatpush1.bf16.msra.mxu0 0
        %375 = vmatprep.subr.bf16.mxu0 0
        %376 = vmatpush1.bf16.msra.mxu0 0
        %377 = vmatprep.mubr.bf16.mxu0 0
        %378 = vmatmul.mubr.bf16.gmra.mrb[0].mxu0 %v298
        %v379 = vpop.f32.mrb[0].mxu0
        %v380 = vadd.f32 %v258, %v379
        %v381 = vpop.f32.mrb[0].mxu0
        %v382 = vpop.f32.mrb[0].mxu0
        %v383 = vadd.f32 %v258, %v382
        %v384 = vpop.f32.mrb[0].mxu0
        %385 = vmatprep.mubr.bf16.mxu0 0
        %386 = vmatmul.mubr.bf16.gmra.mrb[0].mxu0 %v301
        %v387 = vpop.f32.mrb[0].mxu0
        %v388 = vadd.f32 %v258, %v387
        %v389 = vpop.f32.mrb[0].mxu0
        %v390 = vpop.f32.mrb[0].mxu0
        %v391 = vadd.f32 %v258, %v390
        %v392 = vpop.f32.mrb[0].mxu0
        %393 = vmatprep.mubr.bf16.mxu0 0
        %394 = vmatmul.mubr.bf16.gmra.mrb[0].mxu0 %v304
        %v395 = vpop.f32.mrb[0].mxu0
        %v396 = vadd.f32 %v258, %v395
        %v397 = vpop.f32.mrb[0].mxu0
        %v398 = vpop.f32.mrb[0].mxu0
        %v399 = vadd.f32 %v258, %v398
        %v400 = vpop.f32.mrb[0].mxu0
        %401 = vmatprep.mubr.bf16.mxu0 0
        %402 = vmatmul.mubr.bf16.gmra.mrb[0].mxu0 %v307
        %v403 = vpop.f32.mrb[0].mxu0
        %v404 = vadd.f32 %v258, %v403
        %v405 = vpop.f32.mrb[0].mxu0
        %v406 = vpop.f32.mrb[0].mxu0
        %v407 = vadd.f32 %v258, %v406
        %v408 = vpop.f32.mrb[0].mxu0
        %409 = vmatprep.mubr.bf16.mxu0 0
        %410 = vmatmul.mubr.bf16.gmra.mrb[0].mxu0 %v310
        %v411 = vpop.f32.mrb[0].mxu0
        %v412 = vadd.f32 %v258, %v411
        %v413 = vpop.f32.mrb[0].mxu0
        %v414 = vpop.f32.mrb[0].mxu0
        %v415 = vadd.f32 %v258, %v414
        %v416 = vpop.f32.mrb[0].mxu0
        %417 = vmatprep.mubr.bf16.mxu0 0
        %418 = vmatmul.mubr.bf16.gmra.mrb[0].mxu0 %v313
        %v419 = vpop.f32.mrb[0].mxu0
        %v420 = vadd.f32 %v258, %v419
        %v421 = vpop.f32.mrb[0].mxu0
        %v422 = vpop.f32.mrb[0].mxu0
        %v423 = vadd.f32 %v258, %v422
        %v424 = vpop.f32.mrb[0].mxu0
        %425 = vmatprep.mubr.bf16.mxu0 0
        %426 = vmatmul.mubr.bf16.gmra.mrb[0].mxu0 %v316
        %v427 = vpop.f32.mrb[0].mxu0
        %v428 = vadd.f32 %v258, %v427
        %v429 = vpop.f32.mrb[0].mxu0
        %v430 = vpop.f32.mrb[0].mxu0
        %v431 = vadd.f32 %v258, %v430
        %v432 = vpop.f32.mrb[0].mxu0
        %433 = vmatprep.mubr.bf16.mxu0 0
        %434 = vmatmul.mubr.bf16.gmra.mrb[0].mxu0 %v319
        %v435 = vpop.f32.mrb[0].mxu0
        %v436 = vadd.f32 %v258, %v435
        %v437 = vpop.f32.mrb[0].mxu0
        %v438 = vpop.f32.mrb[0].mxu0
        %v439 = vadd.f32 %v258, %v438
        %v440 = vpop.f32.mrb[0].mxu0
        %441 = vmatprep.mubr.bf16.mxu0 0
        %442 = vmatmul.mubr.bf16.gmra.mrb[0].mxu0 %v322
        %v443 = vpop.f32.mrb[0].mxu0
        %v444 = vadd.f32 %v258, %v443
        %v445 = vpop.f32.mrb[0].mxu0
        %v446 = vpop.f32.mrb[0].mxu0
        %v447 = vadd.f32 %v258, %v446
        %v448 = vpop.f32.mrb[0].mxu0
        %449 = vmatprep.mubr.bf16.mxu0 0
        %450 = vmatmul.mubr.bf16.gmra.mrb[0].mxu0 %v325
        %v451 = vpop.f32.mrb[0].mxu0
        %v452 = vadd.f32 %v258, %v451
        %v453 = vpop.f32.mrb[0].mxu0
        %v454 = vpop.f32.mrb[0].mxu0
        %v455 = vadd.f32 %v258, %v454
        %v456 = vpop.f32.mrb[0].mxu0
        %457 = vmatprep.mubr.bf16.mxu0 0
        %458 = vmatmul.mubr.bf16.gmra.mrb[0].mxu0 %v328
        %v459 = vpop.f32.mrb[0].mxu0
        %v460 = vadd.f32 %v258, %v459
        %v461 = vpop.f32.mrb[0].mxu0
        %v462 = vpop.f32.mrb[0].mxu0
        %v463 = vadd.f32 %v258, %v462
        %v464 = vpop.f32.mrb[0].mxu0
        %465 = vmatprep.mubr.bf16.mxu0 0
        %466 = vmatmul.mubr.bf16.gmra.mrb[0].mxu0 %v331
        %v467 = vpop.f32.mrb[0].mxu0
        %v468 = vadd.f32 %v258, %v467
        %v469 = vpop.f32.mrb[0].mxu0
        %v470 = vpop.f32.mrb[0].mxu0
        %v471 = vadd.f32 %v258, %v470
        %v472 = vpop.f32.mrb[0].mxu0
        %473 = vmatprep.mubr.bf16.mxu0 0
        %474 = vmatmul.mubr.bf16.gmra.mrb[0].mxu0 %v334
        %v475 = vpop.f32.mrb[0].mxu0
        %v476 = vadd.f32 %v258, %v475
        %v477 = vpop.f32.mrb[0].mxu0
        %v478 = vpop.f32.mrb[0].mxu0
        %v479 = vadd.f32 %v258, %v478
        %v480 = vpop.f32.mrb[0].mxu0
        %481 = vmatprep.mubr.bf16.mxu0 0
        %482 = vmatmul.mubr.bf16.gmra.mrb[0].mxu0 %v337
        %v483 = vpop.f32.mrb[0].mxu0
        %v484 = vadd.f32 %v258, %v483
        %v485 = vpop.f32.mrb[0].mxu0
        %v486 = vpop.f32.mrb[0].mxu0
        %v487 = vadd.f32 %v258, %v486
        %v488 = vpop.f32.mrb[0].mxu0
        %489 = vmatprep.mubr.bf16.mxu0 0
        %490 = vmatmul.mubr.bf16.gmra.mrb[0].mxu0 %v340
        %v491 = vpop.f32.mrb[0].mxu0
        %v492 = vadd.f32 %v258, %v491
        %v493 = vpop.f32.mrb[0].mxu0
        %v494 = vpop.f32.mrb[0].mxu0
        %v495 = vadd.f32 %v258, %v494
        %v496 = vpop.f32.mrb[0].mxu0
        %497 = vmatprep.mubr.bf16.mxu0 0
        %498 = vmatmul.mubr.bf16.gmra.mrb[0].mxu0 %v343
        %v499 = vpop.f32.mrb[0].mxu0
        %v500 = vadd.f32 %v258, %v499
        %v501 = vpop.f32.mrb[0].mxu0
        %v502 = vpop.f32.mrb[0].mxu0
        %v503 = vadd.f32 %v258, %v502
        %v504 = vpop.f32.mrb[0].mxu0
        %505 = vdwg.mxu0
        %506 = vst [vmem:[%s172] sm:$0xff] %v380
        %507 = vst [vmem:[%s172 + $0x8] sm:$0xff] %v383
        %508 = vst [vmem:[%s172 + $0x10] sm:$0xff] %v388
        %509 = vst [vmem:[%s172 + $0x18] sm:$0xff] %v391
        %510 = vst [vmem:[%s172 + $0x20] sm:$0xff] %v396
        %511 = vst [vmem:[%s172 + $0x28] sm:$0xff] %v399
        %512 = vst [vmem:[%s172 + $0x30] sm:$0xff] %v404
        %513 = vst [vmem:[%s172 + $0x38] sm:$0xff] %v407
        %514 = vst [vmem:[%s172 + $0x40] sm:$0xff] %v412
        %515 = vst [vmem:[%s172 + $0x48] sm:$0xff] %v415
        %516 = vst [vmem:[%s172 + $0x50] sm:$0xff] %v420
        %517 = vst [vmem:[%s172 + $0x58] sm:$0xff] %v423
        %518 = vst [vmem:[%s172 + $0x60] sm:$0xff] %v428
        %519 = vst [vmem:[%s172 + $0x68] sm:$0xff] %v431
        %520 = vst [vmem:[%s172 + $0x70] sm:$0xff] %v436
        %521 = vst [vmem:[%s172 + $0x78] sm:$0xff] %v439
        %522 = vst [vmem:[%s172 + $0x80] sm:$0xff] %v444
        %523 = vst [vmem:[%s172 + $0x88] sm:$0xff] %v447
        %524 = vst [vmem:[%s172 + $0x90] sm:$0xff] %v452
        %525 = vst [vmem:[%s172 + $0x98] sm:$0xff] %v455
        %526 = vst [vmem:[%s172 + $0xa0] sm:$0xff] %v460
        %527 = vst [vmem:[%s172 + $0xa8] sm:$0xff] %v463
        %528 = vst [vmem:[%s172 + $0xb0] sm:$0xff] %v468
        %529 = vst [vmem:[%s172 + $0xb8] sm:$0xff] %v471
        %530 = vst [vmem:[%s172 + $0xc0] sm:$0xff] %v476
        %531 = vst [vmem:[%s172 + $0xc8] sm:$0xff] %v479
        %532 = vst [vmem:[%s172 + $0xd0] sm:$0xff] %v484
        %533 = vst [vmem:[%s172 + $0xd8] sm:$0xff] %v487
        %534 = vst [vmem:[%s172 + $0xe0] sm:$0xff] %v492
        %535 = vst [vmem:[%s172 + $0xe8] sm:$0xff] %v495
        %536 = vst [vmem:[%s172 + $0xf0] sm:$0xff] %v500
        %537 = vst [vmem:[%s172 + $0xf8] sm:$0xff] %v503
        %s538 = sand.u32 %s90, 1
        %s539 = sand.u32 %s90, 1
        %s540 = smul.addr %s539, 256
        %s541 = scalar_lea.vmem [#allocation2], %s540
        // Predicated region
        $region33: #{rating_prediction_forward.3} parent=31 // pred_check
          %p542 = pneg %p100
        $region34: #{rating_prediction_forward.3} parent=31 // pred_check_branch
          %544 = sbr.rel (%p542) target = $region36
        $region35: #{rating_prediction_forward.3} parent=31 // pred_region
          %s545 = smul.u32 32, %s14
          %s546 = ssub.s32 65, %s545
          %p547 = scmp.lt.s32.totalorder %s546, 32
          %s548 = scalar_select %p547, %s546, 32
          %s549 = smul.u32 128, %s548
          %p550 = scmp.ne.s32.totalorder 0, %s549
          %s551 = smul.addr %s545, 8
          %s552 = scalar_lea.vmem %s3, %s551
          // Predicated region
          $region37: #{rating_prediction_forward.3} parent=35 // pred_check
            %p553 = pneg %p550
          $region38: #{rating_prediction_forward.3} parent=35 // pred_check_branch
            %555 = sbr.rel (%p553) target = $region40
          $region39: #{rating_prediction_forward.3} parent=35 // pred_region
            // Predicated region
            $region41: #{rating_prediction_forward.3} parent=39 // pred_check
              _
            $region42: #{rating_prediction_forward.3} parent=39 // pred_check_branch
              %557 = sbr.rel (0) target = $region44
            $region43: #{rating_prediction_forward.3} parent=39 // pred_region
              // Predicated region
              $region63: #{rating_prediction_forward.3} parent=43 // pred_check
                _
              $region64: #{rating_prediction_forward.3} parent=43 // pred_check_branch
                %668 = sbr.rel (0) target = $region66
              $region65: #{rating_prediction_forward.3} parent=43 // pred_region
                %s669 = sshrl.u32 %s548, 5
                // While loop
                $region67: #{rating_prediction_forward.3} parent=65 // loop_pre_header
                  _
                $region68: #{rating_prediction_forward.3} parent=65 // loop_header
                  %s671 = sphi 0, %s673
                  %p672 = scmp.ge.s32.totalorder %s671, %s669
                  %s676 = sphi 0, %s745
                  %s677 = sphi %s541, %s748
                  %s678 = sphi %s552, %s749
                $region69: #{rating_prediction_forward.3} parent=65 // loop_header_branch
                  %675 = sbr.rel (%p672) target = $region73
                $region70: #{rating_prediction_forward.3} parent=65 // loop_body
                  %v679 = vld [vmem:[%s677] sm:$0xff]
                  %680 = vst [vmem:[%s678] sm:$0xff] %v679
                  %v681 = vld [vmem:[%s677 + $0x8] sm:$0xff]
                  %682 = vst [vmem:[%s678 + $0x8] sm:$0xff] %v681
                  %v683 = vld [vmem:[%s677 + $0x10] sm:$0xff]
                  %684 = vst [vmem:[%s678 + $0x10] sm:$0xff] %v683
                  %v685 = vld [vmem:[%s677 + $0x18] sm:$0xff]
                  %686 = vst [vmem:[%s678 + $0x18] sm:$0xff] %v685
                  %v687 = vld [vmem:[%s677 + $0x20] sm:$0xff]
                  %688 = vst [vmem:[%s678 + $0x20] sm:$0xff] %v687
                  %v689 = vld [vmem:[%s677 + $0x28] sm:$0xff]
                  %690 = vst [vmem:[%s678 + $0x28] sm:$0xff] %v689
                  %v691 = vld [vmem:[%s677 + $0x30] sm:$0xff]
                  %692 = vst [vmem:[%s678 + $0x30] sm:$0xff] %v691
                  %v693 = vld [vmem:[%s677 + $0x38] sm:$0xff]
                  %694 = vst [vmem:[%s678 + $0x38] sm:$0xff] %v693
                  %v695 = vld [vmem:[%s677 + $0x40] sm:$0xff]
                  %696 = vst [vmem:[%s678 + $0x40] sm:$0xff] %v695
                  %v697 = vld [vmem:[%s677 + $0x48] sm:$0xff]
                  %698 = vst [vmem:[%s678 + $0x48] sm:$0xff] %v697
                  %v699 = vld [vmem:[%s677 + $0x50] sm:$0xff]
                  %700 = vst [vmem:[%s678 + $0x50] sm:$0xff] %v699
                  %v701 = vld [vmem:[%s677 + $0x58] sm:$0xff]
                  %702 = vst [vmem:[%s678 + $0x58] sm:$0xff] %v701
                  %v703 = vld [vmem:[%s677 + $0x60] sm:$0xff]
                  %704 = vst [vmem:[%s678 + $0x60] sm:$0xff] %v703
                  %v705 = vld [vmem:[%s677 + $0x68] sm:$0xff]
                  %706 = vst [vmem:[%s678 + $0x68] sm:$0xff] %v705
                  %v707 = vld [vmem:[%s677 + $0x70] sm:$0xff]
                  %708 = vst [vmem:[%s678 + $0x70] sm:$0xff] %v707
                  %v709 = vld [vmem:[%s677 + $0x78] sm:$0xff]
                  %710 = vst [vmem:[%s678 + $0x78] sm:$0xff] %v709
                  %v711 = vld [vmem:[%s677 + $0x80] sm:$0xff]
                  %712 = vst [vmem:[%s678 + $0x80] sm:$0xff] %v711
                  %v713 = vld [vmem:[%s677 + $0x88] sm:$0xff]
                  %714 = vst [vmem:[%s678 + $0x88] sm:$0xff] %v713
                  %v715 = vld [vmem:[%s677 + $0x90] sm:$0xff]
                  %716 = vst [vmem:[%s678 + $0x90] sm:$0xff] %v715
                  %v717 = vld [vmem:[%s677 + $0x98] sm:$0xff]
                  %718 = vst [vmem:[%s678 + $0x98] sm:$0xff] %v717
                  %v719 = vld [vmem:[%s677 + $0xa0] sm:$0xff]
                  %720 = vst [vmem:[%s678 + $0xa0] sm:$0xff] %v719
                  %v721 = vld [vmem:[%s677 + $0xa8] sm:$0xff]
                  %722 = vst [vmem:[%s678 + $0xa8] sm:$0xff] %v721
                  %v723 = vld [vmem:[%s677 + $0xb0] sm:$0xff]
                  %724 = vst [vmem:[%s678 + $0xb0] sm:$0xff] %v723
                  %v725 = vld [vmem:[%s677 + $0xb8] sm:$0xff]
                  %726 = vst [vmem:[%s678 + $0xb8] sm:$0xff] %v725
                  %v727 = vld [vmem:[%s677 + $0xc0] sm:$0xff]
                  %728 = vst [vmem:[%s678 + $0xc0] sm:$0xff] %v727
                  %v729 = vld [vmem:[%s677 + $0xc8] sm:$0xff]
                  %730 = vst [vmem:[%s678 + $0xc8] sm:$0xff] %v729
                  %v731 = vld [vmem:[%s677 + $0xd0] sm:$0xff]
                  %732 = vst [vmem:[%s678 + $0xd0] sm:$0xff] %v731
                  %v733 = vld [vmem:[%s677 + $0xd8] sm:$0xff]
                  %734 = vst [vmem:[%s678 + $0xd8] sm:$0xff] %v733
                  %v735 = vld [vmem:[%s677 + $0xe0] sm:$0xff]
                  %736 = vst [vmem:[%s678 + $0xe0] sm:$0xff] %v735
                  %v737 = vld [vmem:[%s677 + $0xe8] sm:$0xff]
                  %738 = vst [vmem:[%s678 + $0xe8] sm:$0xff] %v737
                  %v739 = vld [vmem:[%s677 + $0xf0] sm:$0xff]
                  %740 = vst [vmem:[%s678 + $0xf0] sm:$0xff] %v739
                  %v741 = vld [vmem:[%s677 + $0xf8] sm:$0xff]
                  %742 = vst [vmem:[%s678 + $0xf8] sm:$0xff] %v741
                  %s743 = sadd.s32 1, %s676
                  %p744 = scmp.ge.s32.totalorder %s743, %s669
                  %s745 = scalar_select %p744, 0, %s743
                  %s746 = smul.u32 %s745, 256
                  %s747 = smul.u32 %s745, 256
                  %s748 = scalar_lea.vmem %s541, %s746 [#allocation2]
                  %s749 = scalar_lea.vmem %s552, %s747
                $region71: #{rating_prediction_forward.3} parent=65 // loop_footer
                  %s673 = sadd.s32 %s671, 1
                $region72: #{rating_prediction_forward.3} parent=65 // loop_footer_branch
                  %670 = sbr.rel target = $region68
                $region73: #{rating_prediction_forward.3} parent=65 // loop_exit
                  _
                %s750 = sshrl.u32 %s548, 5
                %s751 = sand.u32 %s548, 31
                %s752 = smul.u32 %s750, 32
                %s753 = smul.u32 8, %s752
                %s754 = scalar_lea.vmem %s541, %s753 [#allocation2]
                %s755 = smul.u32 8, %s752
                %s756 = scalar_lea.vmem %s552, %s755
                // While loop
                $region74: #{rating_prediction_forward.3} parent=65 // loop_pre_header
                  _
                $region75: #{rating_prediction_forward.3} parent=65 // loop_header
                  %s758 = sphi 0, %s760
                  %p759 = scmp.ge.s32.totalorder %s758, %s751
                  %s763 = sphi 0, %s770
                  %s764 = sphi %s754, %s773
                  %s765 = sphi %s756, %s774
                $region76: #{rating_prediction_forward.3} parent=65 // loop_header_branch
                  %762 = sbr.rel (%p759) target = $region80
                $region77: #{rating_prediction_forward.3} parent=65 // loop_body
                  %v766 = vld [vmem:[%s764] sm:$0xff]
                  %767 = vst [vmem:[%s765] sm:$0xff] %v766
                  %s768 = sadd.s32 1, %s763
                  %p769 = scmp.ge.s32.totalorder %s768, %s751
                  %s770 = scalar_select %p769, 0, %s768
                  %s771 = smul.u32 %s770, 8
                  %s772 = smul.u32 %s770, 8
                  %s773 = scalar_lea.vmem %s754, %s771 [#allocation2]
                  %s774 = scalar_lea.vmem %s756, %s772
                $region78: #{rating_prediction_forward.3} parent=65 // loop_footer
                  %s760 = sadd.s32 %s758, 1
                $region79: #{rating_prediction_forward.3} parent=65 // loop_footer_branch
                  %757 = sbr.rel target = $region75
                $region80: #{rating_prediction_forward.3} parent=65 // loop_exit
                  _
              $region66: #{rating_prediction_forward.3} parent=43 // pred_fallthru
                _
              // Predicated region
              $region81: #{rating_prediction_forward.3} parent=43 // pred_check
                _
              $region82: #{rating_prediction_forward.3} parent=43 // pred_check_branch
                %776 = sbr.rel target = $region84
              $region83: #{rating_prediction_forward.3} parent=43 // pred_region
                _
              $region84: #{rating_prediction_forward.3} parent=43 // pred_fallthru
                _
            $region44: #{rating_prediction_forward.3} parent=39 // pred_fallthru
              _
            // Predicated region
            $region45: #{rating_prediction_forward.3} parent=39 // pred_check
              _
            $region46: #{rating_prediction_forward.3} parent=39 // pred_check_branch
              %559 = sbr.rel target = $region48
            $region47: #{rating_prediction_forward.3} parent=39 // pred_region
              %s561 = sshrl.u32 %s548, 5
              // While loop
              $region49: #{rating_prediction_forward.3} parent=47 // loop_pre_header
                _
              $region50: #{rating_prediction_forward.3} parent=47 // loop_header
                %s563 = sphi 0, %s565
                %p564 = scmp.ge.s32.totalorder %s563, %s561
                %s568 = sphi 0, %s637
                %s569 = sphi %s541, %s640
                %s570 = sphi %s552, %s641
              $region51: #{rating_prediction_forward.3} parent=47 // loop_header_branch
                %567 = sbr.rel (%p564) target = $region55
              $region52: #{rating_prediction_forward.3} parent=47 // loop_body
                %v571 = vld [vmem:[%s569] sm:$0xff]
                %572 = vst [vmem:[%s570] sm:$0xff] %v571
                %v573 = vld [vmem:[%s569 + $0x8] sm:$0xff]
                %574 = vst [vmem:[%s570 + $0x8] sm:$0xff] %v573
                %v575 = vld [vmem:[%s569 + $0x10] sm:$0xff]
                %576 = vst [vmem:[%s570 + $0x10] sm:$0xff] %v575
                %v577 = vld [vmem:[%s569 + $0x18] sm:$0xff]
                %578 = vst [vmem:[%s570 + $0x18] sm:$0xff] %v577
                %v579 = vld [vmem:[%s569 + $0x20] sm:$0xff]
                %580 = vst [vmem:[%s570 + $0x20] sm:$0xff] %v579
                %v581 = vld [vmem:[%s569 + $0x28] sm:$0xff]
                %582 = vst [vmem:[%s570 + $0x28] sm:$0xff] %v581
                %v583 = vld [vmem:[%s569 + $0x30] sm:$0xff]
                %584 = vst [vmem:[%s570 + $0x30] sm:$0xff] %v583
                %v585 = vld [vmem:[%s569 + $0x38] sm:$0xff]
                %586 = vst [vmem:[%s570 + $0x38] sm:$0xff] %v585
                %v587 = vld [vmem:[%s569 + $0x40] sm:$0xff]
                %588 = vst [vmem:[%s570 + $0x40] sm:$0xff] %v587
                %v589 = vld [vmem:[%s569 + $0x48] sm:$0xff]
                %590 = vst [vmem:[%s570 + $0x48] sm:$0xff] %v589
                %v591 = vld [vmem:[%s569 + $0x50] sm:$0xff]
                %592 = vst [vmem:[%s570 + $0x50] sm:$0xff] %v591
                %v593 = vld [vmem:[%s569 + $0x58] sm:$0xff]
                %594 = vst [vmem:[%s570 + $0x58] sm:$0xff] %v593
                %v595 = vld [vmem:[%s569 + $0x60] sm:$0xff]
                %596 = vst [vmem:[%s570 + $0x60] sm:$0xff] %v595
                %v597 = vld [vmem:[%s569 + $0x68] sm:$0xff]
                %598 = vst [vmem:[%s570 + $0x68] sm:$0xff] %v597
                %v599 = vld [vmem:[%s569 + $0x70] sm:$0xff]
                %600 = vst [vmem:[%s570 + $0x70] sm:$0xff] %v599
                %v601 = vld [vmem:[%s569 + $0x78] sm:$0xff]
                %602 = vst [vmem:[%s570 + $0x78] sm:$0xff] %v601
                %v603 = vld [vmem:[%s569 + $0x80] sm:$0xff]
                %604 = vst [vmem:[%s570 + $0x80] sm:$0xff] %v603
                %v605 = vld [vmem:[%s569 + $0x88] sm:$0xff]
                %606 = vst [vmem:[%s570 + $0x88] sm:$0xff] %v605
                %v607 = vld [vmem:[%s569 + $0x90] sm:$0xff]
                %608 = vst [vmem:[%s570 + $0x90] sm:$0xff] %v607
                %v609 = vld [vmem:[%s569 + $0x98] sm:$0xff]
                %610 = vst [vmem:[%s570 + $0x98] sm:$0xff] %v609
                %v611 = vld [vmem:[%s569 + $0xa0] sm:$0xff]
                %612 = vst [vmem:[%s570 + $0xa0] sm:$0xff] %v611
                %v613 = vld [vmem:[%s569 + $0xa8] sm:$0xff]
                %614 = vst [vmem:[%s570 + $0xa8] sm:$0xff] %v613
                %v615 = vld [vmem:[%s569 + $0xb0] sm:$0xff]
                %616 = vst [vmem:[%s570 + $0xb0] sm:$0xff] %v615
                %v617 = vld [vmem:[%s569 + $0xb8] sm:$0xff]
                %618 = vst [vmem:[%s570 + $0xb8] sm:$0xff] %v617
                %v619 = vld [vmem:[%s569 + $0xc0] sm:$0xff]
                %620 = vst [vmem:[%s570 + $0xc0] sm:$0xff] %v619
                %v621 = vld [vmem:[%s569 + $0xc8] sm:$0xff]
                %622 = vst [vmem:[%s570 + $0xc8] sm:$0xff] %v621
                %v623 = vld [vmem:[%s569 + $0xd0] sm:$0xff]
                %624 = vst [vmem:[%s570 + $0xd0] sm:$0xff] %v623
                %v625 = vld [vmem:[%s569 + $0xd8] sm:$0xff]
                %626 = vst [vmem:[%s570 + $0xd8] sm:$0xff] %v625
                %v627 = vld [vmem:[%s569 + $0xe0] sm:$0xff]
                %628 = vst [vmem:[%s570 + $0xe0] sm:$0xff] %v627
                %v629 = vld [vmem:[%s569 + $0xe8] sm:$0xff]
                %630 = vst [vmem:[%s570 + $0xe8] sm:$0xff] %v629
                %v631 = vld [vmem:[%s569 + $0xf0] sm:$0xff]
                %632 = vst [vmem:[%s570 + $0xf0] sm:$0xff] %v631
                %v633 = vld [vmem:[%s569 + $0xf8] sm:$0xff]
                %634 = vst [vmem:[%s570 + $0xf8] sm:$0xff] %v633
                %s635 = sadd.s32 1, %s568
                %p636 = scmp.ge.s32.totalorder %s635, %s561
                %s637 = scalar_select %p636, 0, %s635
                %s638 = smul.u32 %s637, 256
                %s639 = smul.u32 %s637, 256
                %s640 = scalar_lea.vmem %s541, %s638 [#allocation2]
                %s641 = scalar_lea.vmem %s552, %s639
              $region53: #{rating_prediction_forward.3} parent=47 // loop_footer
                %s565 = sadd.s32 %s563, 1
              $region54: #{rating_prediction_forward.3} parent=47 // loop_footer_branch
                %562 = sbr.rel target = $region50
              $region55: #{rating_prediction_forward.3} parent=47 // loop_exit
                _
              %s642 = sshrl.u32 %s548, 5
              %s643 = sand.u32 %s548, 31
              %s644 = smul.u32 %s642, 32
              %s645 = smul.u32 8, %s644
              %s646 = scalar_lea.vmem %s541, %s645 [#allocation2]
              %s647 = smul.u32 8, %s644
              %s648 = scalar_lea.vmem %s552, %s647
              // While loop
              $region56: #{rating_prediction_forward.3} parent=47 // loop_pre_header
                _
              $region57: #{rating_prediction_forward.3} parent=47 // loop_header
                %s650 = sphi 0, %s652
                %p651 = scmp.ge.s32.totalorder %s650, %s643
                %s655 = sphi 0, %s662
                %s656 = sphi %s646, %s665
                %s657 = sphi %s648, %s666
              $region58: #{rating_prediction_forward.3} parent=47 // loop_header_branch
                %654 = sbr.rel (%p651) target = $region62
              $region59: #{rating_prediction_forward.3} parent=47 // loop_body
                %v658 = vld [vmem:[%s656] sm:$0xff]
                %659 = vst [vmem:[%s657] sm:$0xff] %v658
                %s660 = sadd.s32 1, %s655
                %p661 = scmp.ge.s32.totalorder %s660, %s643
                %s662 = scalar_select %p661, 0, %s660
                %s663 = smul.u32 %s662, 8
                %s664 = smul.u32 %s662, 8
                %s665 = scalar_lea.vmem %s646, %s663 [#allocation2]
                %s666 = scalar_lea.vmem %s648, %s664
              $region60: #{rating_prediction_forward.3} parent=47 // loop_footer
                %s652 = sadd.s32 %s650, 1
              $region61: #{rating_prediction_forward.3} parent=47 // loop_footer_branch
                %649 = sbr.rel target = $region57
              $region62: #{rating_prediction_forward.3} parent=47 // loop_exit
                _
            $region48: #{rating_prediction_forward.3} parent=39 // pred_fallthru
              _
          $region40: #{rating_prediction_forward.3} parent=35 // pred_fallthru
            _
          %777 = vnop
        $region36: #{rating_prediction_forward.3} parent=31 // pred_fallthru
          _
      $region32: #{rating_prediction_forward.3} parent=5 // pred_fallthru
        _
      %p778 = scmp.le.s32.totalorder 2, %s9
      // Predicated region
      $region85: #{rating_prediction_forward.3} parent=5 // pred_check
        %p779 = pneg %p778
      $region86: #{rating_prediction_forward.3} parent=5 // pred_check_branch
        %781 = sbr.rel (%p779) target = $region88
      $region87: #{rating_prediction_forward.3} parent=5 // pred_region
        %s782 = ssub.s32 %s9, 2
        // Predicated region
        $region89: #{rating_prediction_forward.3} parent=87 // pred_check
          %p783 = pneg %p106
        $region90: #{rating_prediction_forward.3} parent=87 // pred_check_branch
          %785 = sbr.rel (%p783) target = $region92
        $region91: #{rating_prediction_forward.3} parent=87 // pred_region
          %s786 = sand.u32 %s91, 1
          %s787 = sand.u32 %s91, 1
          %s788 = smul.addr %s787, 256
          %s789 = scalar_lea.vmem [#allocation2], %s788
        $region92: #{rating_prediction_forward.3} parent=87 // pred_fallthru
          _
      $region88: #{rating_prediction_forward.3} parent=5 // pred_fallthru
        _
    $region6: #{rating_prediction_forward.3} parent=1 // loop_footer
      %s13 = sadd.s32 1, %s9
    $region7: #{rating_prediction_forward.3} parent=1 // loop_footer_branch
      %8 = sbr.rel target = $region3
    $region8: #{rating_prediction_forward.3} parent=1 // loop_exit
      _

// kernel: rating_prediction_forward.4
$region0: #{rating_prediction_forward.4}
  #allocation0 [shape = 'u32[]', space=smem, size = 0x4, offset = 0x4, fixed_abs, tag = 'smem constant byte address 0x4 - core index']
  #allocation1 [shape = 'u32[144,128]{1,0:T(1,128)}', space=vmem, size = 0x12000, scoped, tag = 'internal scratch']
  %s0 = inlined_call_operand.vmem [shape: f32[384,96], index: 0, kind: input, shape index: {}]
  %s1 = inlined_call_operand.vmem [shape: bf16[96,128], index: 1, kind: input, shape index: {}]
  %s2 = inlined_call_operand.vmem [shape: f32[1,128], index: 2, kind: input, shape index: {}]
  %s3 = inlined_call_operand.vmem [shape: f32[384,128], index: 3, kind: output, shape index: {}]
  %s4 = sld [smem:[#allocation0]]
  $region93: #{rating_prediction_forward.4} parent=0
    _
  %s6 = ssub.s32 1, %s4
  %s7 = scalar_select 0, %s6, %s4
  $region1: #{rating_prediction_forward.4} parent=0
    #allocation2 [shape = 'u8[262144]{0}', space=vmem, size = 0x40000, scoped, tag = 'output window, operand 0']
    loop: start=0, step=1, limit=4
    $region2: #{rating_prediction_forward.4} parent=1 // loop_pre_header
      _
    $region3: #{rating_prediction_forward.4} parent=1 // loop_header
      %s9 = sphi 0, %s13
      %p10 = scmp.ge.s32.totalorder %s9, 4
      %s19 = sphi 0, %s21
      %s22 = sphi 0, %s19
      %s23 = sphi 0, %s22
      %s39 = sphi 0, %s23
      %s43 = sphi 0, %s43
      %s45 = sphi 0, %s43
      %s46 = sphi 0, %s45
      %s60 = sphi 0, %s46
      %s64 = sphi 0, %s64
      %s66 = sphi 0, %s64
      %s67 = sphi 0, %s66
      %s81 = sphi 0, %s67
      %s87 = sphi 0, %s89
      %s90 = sphi 0, %s87
      %s91 = sphi 0, %s90
      %s107 = sphi 0, %s91
    $region4: #{rating_prediction_forward.4} parent=1 // loop_header_branch
      %12 = sbr.rel (%p10) target = $region8
    $region5: #{rating_prediction_forward.4} parent=1 // loop_body
      %s14 = ssub.s32 %s9, 1
      %s15 = ssub.s32 %s9, 2
      %s16 = sadd.s32 %s9, 1
      %s17 = ssub.s32 %s9, %s16
      %p18 = scmp.eq.s32.totalorder %s17, 0
      %s20 = sadd.s32 %s19, 1
      %s21 = scalar_select %p18, %s19, %s20
      %p24 = pneg %p18
      %p25 = scmp.eq.s32.totalorder %s9, 1
      %p26 = por %p24, %p25
      %p27 = scmp.ne.s32.totalorder %s19, %s22
      %p28 = scmp.eq.s32.totalorder %s9, 0
      %p29 = por %p27, %p28
      %p30 = scmp.ne.s32.totalorder %s19, %s22
      %p31 = scmp.eq.s32.totalorder %s14, 1
      %p32 = por %p30, %p31
      %p33 = scmp.ne.s32.totalorder %s22, %s23
      %p34 = scmp.eq.s32.totalorder %s14, 0
      %p35 = por %p33, %p34
      %p36 = scmp.ne.s32.totalorder %s22, %s23
      %p37 = scmp.eq.s32.totalorder %s15, 1
      %p38 = por %p36, %p37
      %p40 = scmp.ne.s32.totalorder %s23, %s39
      %p41 = scmp.eq.s32.totalorder %s15, 0
      %p42 = por %p40, %p41
      %s44 = sadd.s32 %s43, 1
      %p47 = scmp.eq.s32.totalorder %s9, 1
      %p48 = scmp.ne.s32.totalorder %s43, %s45
      %p49 = scmp.eq.s32.totalorder %s9, 0
      %p50 = por %p48, %p49
      %p51 = scmp.ne.s32.totalorder %s43, %s45
      %p52 = scmp.eq.s32.totalorder %s14, 1
      %p53 = por %p51, %p52
      %p54 = scmp.ne.s32.totalorder %s45, %s46
      %p55 = scmp.eq.s32.totalorder %s14, 0
      %p56 = por %p54, %p55
      %p57 = scmp.ne.s32.totalorder %s45, %s46
      %p58 = scmp.eq.s32.totalorder %s15, 1
      %p59 = por %p57, %p58
      %p61 = scmp.ne.s32.totalorder %s46, %s60
      %p62 = scmp.eq.s32.totalorder %s15, 0
      %p63 = por %p61, %p62
      %s65 = sadd.s32 %s64, 1
      %p68 = scmp.eq.s32.totalorder %s9, 1
      %p69 = scmp.ne.s32.totalorder %s64, %s66
      %p70 = scmp.eq.s32.totalorder %s9, 0
      %p71 = por %p69, %p70
      %p72 = scmp.ne.s32.totalorder %s64, %s66
      %p73 = scmp.eq.s32.totalorder %s14, 1
      %p74 = por %p72, %p73
      %p75 = scmp.ne.s32.totalorder %s66, %s67
      %p76 = scmp.eq.s32.totalorder %s14, 0
      %p77 = por %p75, %p76
      %p78 = scmp.ne.s32.totalorder %s66, %s67
      %p79 = scmp.eq.s32.totalorder %s15, 1
      %p80 = por %p78, %p79
      %p82 = scmp.ne.s32.totalorder %s67, %s81
      %p83 = scmp.eq.s32.totalorder %s15, 0
      %p84 = por %p82, %p83
      %s85 = ssub.s32 %s9, %s16
      %p86 = scmp.eq.s32.totalorder %s85, 0
      %s88 = sadd.s32 %s87, 1
      %s89 = scalar_select %p86, %s87, %s88
      %p92 = pneg %p86
      %p93 = scmp.eq.s32.totalorder %s9, 1
      %p94 = por %p92, %p93
      %p95 = scmp.ne.s32.totalorder %s87, %s90
      %p96 = scmp.eq.s32.totalorder %s9, 0
      %p97 = por %p95, %p96
      %p98 = scmp.ne.s32.totalorder %s87, %s90
      %p99 = scmp.eq.s32.totalorder %s14, 1
      %p100 = por %p98, %p99
      %p101 = scmp.ne.s32.totalorder %s90, %s91
      %p102 = scmp.eq.s32.totalorder %s14, 0
      %p103 = por %p101, %p102
      %p104 = scmp.ne.s32.totalorder %s90, %s91
      %p105 = scmp.eq.s32.totalorder %s15, 1
      %p106 = por %p104, %p105
      %p108 = scmp.ne.s32.totalorder %s91, %s107
      %p109 = scmp.eq.s32.totalorder %s15, 0
      %p110 = por %p108, %p109
      %p111 = scmp.le.s32.totalorder 1, %s9
      %p112 = scmp.lt.s32.totalorder %s9, 3
      %p113 = pnand %p111, %p112
      %p114 = pneg %p113
      // Predicated region
      $region9: #{rating_prediction_forward.4} parent=5 // pred_check
        _
      $region10: #{rating_prediction_forward.4} parent=5 // pred_check_branch
        %116 = sbr.rel (%p113) target = $region12
      $region11: #{rating_prediction_forward.4} parent=5 // pred_region
        %s117 = ssub.s32 %s9, 1
        // Predicated region
        $region13: #{rating_prediction_forward.4} parent=11 // pred_check
          %p118 = pneg %p56
        $region14: #{rating_prediction_forward.4} parent=11 // pred_check_branch
          %120 = sbr.rel (%p118) target = $region16
        $region15: #{rating_prediction_forward.4} parent=11 // pred_region
          _
        $region16: #{rating_prediction_forward.4} parent=11 // pred_fallthru
          _
        // Predicated region
        $region17: #{rating_prediction_forward.4} parent=11 // pred_check
          %p121 = pneg %p77
        $region18: #{rating_prediction_forward.4} parent=11 // pred_check_branch
          %123 = sbr.rel (%p121) target = $region20
        $region19: #{rating_prediction_forward.4} parent=11 // pred_region
          _
        $region20: #{rating_prediction_forward.4} parent=11 // pred_fallthru
          _
      $region12: #{rating_prediction_forward.4} parent=5 // pred_fallthru
        _
      %p124 = scmp.lt.s32.totalorder %s9, 2
      // Predicated region
      $region21: #{rating_prediction_forward.4} parent=5 // pred_check
        %p125 = pneg %p124
      $region22: #{rating_prediction_forward.4} parent=5 // pred_check_branch
        %127 = sbr.rel (%p125) target = $region24
      $region23: #{rating_prediction_forward.4} parent=5 // pred_region
        // Predicated region
        $region25: #{rating_prediction_forward.4} parent=23 // pred_check
          %p128 = pneg %p29
        $region26: #{rating_prediction_forward.4} parent=23 // pred_check_branch
          %130 = sbr.rel (%p128) target = $region28
        $region27: #{rating_prediction_forward.4} parent=23 // pred_region
          %s131 = smul.u32 32, %s9
          %s132 = ssub.s32 48, %s131
          %p133 = scmp.lt.s32.totalorder %s132, 32
          %s134 = scalar_select %p133, %s132, 32
          %s135 = smul.u32 128, %s134
          %p136 = scmp.lt.s32.totalorder %s131, 47
          %s137 = scalar_select %p136, %s131, 47
          %s138 = smul.addr %s137, 8
          %s139 = scalar_lea.vmem %s0, %s138
          %s140 = smul.u32 32, %s9
          %s141 = ssub.s32 48, %s140
          %p142 = scmp.lt.s32.totalorder %s141, 32
          %s143 = scalar_select %p142, %s141, 32
          %s144 = smul.u32 128, %s143
        $region28: #{rating_prediction_forward.4} parent=23 // pred_fallthru
          _
      $region24: #{rating_prediction_forward.4} parent=5 // pred_fallthru
        _
      %p145 = scmp.le.s32.totalorder 1, %s9
      %p146 = scmp.lt.s32.totalorder %s9, 3
      %p147 = pnand %p145, %p146
      %p148 = pneg %p147
      // Predicated region
      $region29: #{rating_prediction_forward.4} parent=5 // pred_check
        _
      $region30: #{rating_prediction_forward.4} parent=5 // pred_check_branch
        %150 = sbr.rel (%p147) target = $region32
      $region31: #{rating_prediction_forward.4} parent=5 // pred_region
        %s151 = ssub.s32 %s9, 1
        %s152 = smul.u32 32, %s14
        %s153 = ssub.s32 48, %s152
        %p154 = scmp.lt.s32.totalorder %s153, 32
        %s155 = scalar_select %p154, %s153, 32
        %s156 = smul.u32 128, %s155
        %p157 = scmp.lt.s32.totalorder %s152, 47
        %s158 = scalar_select %p157, %s152, 47
        %s159 = smul.addr %s158, 8
        %s160 = scalar_lea.vmem %s0, %s159
        %p161 = pneg %p35
        %p162 = pneg %p32
        %p163 = pneg %p56
        %p164 = pneg %p53
        %p165 = pneg %p77
        %p166 = pneg %p74
        %p167 = pneg %p103
        %p168 = pneg %p100
        %s169 = sand.u32 %s90, 1
        %s170 = sand.u32 %s90, 1
        %s171 = smul.addr %s170, 256
        %s172 = scalar_lea.vmem [#allocation2], %s171
        %s173 = smul.u32 32, %s14
        %s174 = ssub.s32 48, %s173
        %p175 = scmp.lt.s32.totalorder %s174, 32
        %s176 = scalar_select %p175, %s174, 32
        %s177 = smul.u32 128, %s176
        %p178 = scmp.lt.s32.totalorder %s173, 47
        %s179 = scalar_select %p178, %s173, 47
        %s180 = smul.addr %s179, 8
        %s181 = scalar_lea.vmem %s0, %s180
        %s182 = smul.u32 32, %s14
        %s183 = ssub.s32 48, %s182
        %p184 = scmp.lt.s32.totalorder %s183, 32
        %s185 = scalar_select %p184, %s183, 32
        %s186 = smul.u32 128, %s185
        %s187 = smul.u32 32, %s14
        %s188 = ssub.s32 48, %s187
        %p189 = scmp.lt.s32.totalorder %s188, 32
        %s190 = scalar_select %p189, %s188, 32
        %s191 = smul.u32 128, %s190
        %v193 = vld [vmem:[%s181] sm:$0xff]
        %v194 = vld [vmem:[%s181 + $0x8] sm:$0xff]
        %v195 = vld [vmem:[%s181 + $0x10] sm:$0xff]
        %v196 = vld [vmem:[%s181 + $0x18] sm:$0xff]
        %v197 = vld [vmem:[%s181 + $0x20] sm:$0xff]
        %v198 = vld [vmem:[%s181 + $0x28] sm:$0xff]
        %v199 = vld [vmem:[%s181 + $0x30] sm:$0xff]
        %v200 = vld [vmem:[%s181 + $0x38] sm:$0xff]
        %v201 = vld [vmem:[%s181 + $0x40] sm:$0xff]
        %v202 = vld [vmem:[%s181 + $0x48] sm:$0xff]
        %v203 = vld [vmem:[%s181 + $0x50] sm:$0xff]
        %v204 = vld [vmem:[%s181 + $0x58] sm:$0xff]
        %v205 = vld [vmem:[%s181 + $0x60] sm:$0xff]
        %v206 = vld [vmem:[%s181 + $0x68] sm:$0xff]
        %v207 = vld [vmem:[%s181 + $0x70] sm:$0xff]
        %v208 = vld [vmem:[%s181 + $0x78] sm:$0xff]
        %v209 = vld [vmem:[%s181 + $0x80] sm:$0xff]
        %v210 = vld [vmem:[%s181 + $0x88] sm:$0xff]
        %v211 = vld [vmem:[%s181 + $0x90] sm:$0xff]
        %v212 = vld [vmem:[%s181 + $0x98] sm:$0xff]
        %v213 = vld [vmem:[%s181 + $0xa0] sm:$0xff]
        %v214 = vld [vmem:[%s181 + $0xa8] sm:$0xff]
        %v215 = vld [vmem:[%s181 + $0xb0] sm:$0xff]
        %v216 = vld [vmem:[%s181 + $0xb8] sm:$0xff]
        %v217 = vld [vmem:[%s181 + $0xc0] sm:$0xff]
        %v218 = vld [vmem:[%s181 + $0xc8] sm:$0xff]
        %v219 = vld [vmem:[%s181 + $0xd0] sm:$0xff]
        %v220 = vld [vmem:[%s181 + $0xd8] sm:$0xff]
        %v221 = vld [vmem:[%s181 + $0xe0] sm:$0xff]
        %v222 = vld [vmem:[%s181 + $0xe8] sm:$0xff]
        %v223 = vld [vmem:[%s181 + $0xf0] sm:$0xff]
        %v224 = vld [vmem:[%s181 + $0xf8] sm:$0xff]
        %v225 = vpack.c.bf16 %v194, %v193
        %v226 = vpack.c.bf16 %v196, %v195
        %v227 = vpack.c.bf16 %v198, %v197
        %v228 = vpack.c.bf16 %v200, %v199
        %v229 = vpack.c.bf16 %v202, %v201
        %v230 = vpack.c.bf16 %v204, %v203
        %v231 = vpack.c.bf16 %v206, %v205
        %v232 = vpack.c.bf16 %v208, %v207
        %v233 = vpack.c.bf16 %v210, %v209
        %v234 = vpack.c.bf16 %v212, %v211
        %v235 = vpack.c.bf16 %v214, %v213
        %v236 = vpack.c.bf16 %v216, %v215
        %v237 = vpack.c.bf16 %v218, %v217
        %v238 = vpack.c.bf16 %v220, %v219
        %v239 = vpack.c.bf16 %v222, %v221
        %v240 = vpack.c.bf16 %v224, %v223
        %v241 = vld [vmem:[%s1] sm:$0xf]
        %v242 = vld [vmem:[%s1 + $0x4] sm:$0xf]
        %v243 = vld [vmem:[%s1 + $0x8] sm:$0xf]
        %v244 = vld [vmem:[%s1 + $0xc] sm:$0xf]
        %v245 = vld [vmem:[%s1 + $0x10] sm:$0xf]
        %v246 = vld [vmem:[%s1 + $0x14] sm:$0xf]
        %v247 = vld [vmem:[%s1 + $0x18] sm:$0xf]
        %v248 = vld [vmem:[%s1 + $0x1c] sm:$0xf]
        %v249 = vld [vmem:[%s1 + $0x20] sm:$0xf]
        %v250 = vld [vmem:[%s1 + $0x24] sm:$0xf]
        %v251 = vld [vmem:[%s1 + $0x28] sm:$0xf]
        %v252 = vld [vmem:[%s1 + $0x2c] sm:$0xf]
        %v253 = vld [vmem:[%s2] sm:$0x1]
        %v255 = vlaneseq
        %v256 = vshrl.u32 %v255, 7
        %v257 = vsub.s32 0, %v256
        %v258 = vrot.slane %v253, %v257
        %v272 = vunpack.c.l.b16 %v241
        %v273 = vunpack.c.l.b16 %v242
        %v274 = vunpack.c.l.b16 %v243
        %v275 = vunpack.c.l.b16 %v244
        %v276 = vunpack.c.l.b16 %v245
        %v277 = vunpack.c.l.b16 %v246
        %v278 = vunpack.c.l.b16 %v247
        %v279 = vunpack.c.l.b16 %v248
        %v280 = vunpack.c.l.b16 %v249
        %v281 = vunpack.c.l.b16 %v250
        %v282 = vunpack.c.l.b16 %v251
        %v283 = vunpack.c.l.b16 %v252
        %v284 = vpack.c.b16 %v273, %v272
        %v285 = vpack.c.b16 %v275, %v274
        %v286 = vpack.c.b16 %v277, %v276
        %v287 = vpack.c.b16 %v279, %v278
        %v288 = vpack.c.b16 %v281, %v280
        %v289 = vpack.c.b16 %v283, %v282
        %vm296 = vcmask 785408
        %v298 = vsel %vm296, %v225, 0
        %v301 = vsel %vm296, %v226, 0
        %v304 = vsel %vm296, %v227, 0
        %v307 = vsel %vm296, %v228, 0
        %v310 = vsel %vm296, %v229, 0
        %v313 = vsel %vm296, %v230, 0
        %v316 = vsel %vm296, %v231, 0
        %v319 = vsel %vm296, %v232, 0
        %v322 = vsel %vm296, %v233, 0
        %v325 = vsel %vm296, %v234, 0
        %v328 = vsel %vm296, %v235, 0
        %v331 = vsel %vm296, %v236, 0
        %v334 = vsel %vm296, %v237, 0
        %v337 = vsel %vm296, %v238, 0
        %v340 = vsel %vm296, %v239, 0
        %v343 = vsel %vm296, %v240, 0
        %345 = vmatprep.subr.bf16.mxu0 0
        %346 = vmatpush1.bf16.msra.mxu0 %v284
        %347 = vmatprep.subr.bf16.mxu0 0
        %348 = vmatpush1.bf16.msra.mxu0 %v285
        %349 = vmatprep.subr.bf16.mxu0 0
        %350 = vmatpush1.bf16.msra.mxu0 %v286
        %351 = vmatprep.subr.bf16.mxu0 0
        %352 = vmatpush1.bf16.msra.mxu0 %v287
        %353 = vmatprep.subr.bf16.mxu0 0
        %354 = vmatpush1.bf16.msra.mxu0 %v288
        %355 = vmatprep.subr.bf16.mxu0 0
        %356 = vmatpush1.bf16.msra.mxu0 %v289
        %357 = vmatprep.subr.bf16.mxu0 0
        %358 = vmatpush1.bf16.msra.mxu0 0
        %359 = vmatprep.subr.bf16.mxu0 0
        %360 = vmatpush1.bf16.msra.mxu0 0
        %361 = vmatprep.subr.bf16.mxu0 0
        %362 = vmatpush1.bf16.msra.mxu0 0
        %363 = vmatprep.subr.bf16.mxu0 0
        %364 = vmatpush1.bf16.msra.mxu0 0
        %365 = vmatprep.subr.bf16.mxu0 0
        %366 = vmatpush1.bf16.msra.mxu0 0
        %367 = vmatprep.subr.bf16.mxu0 0
        %368 = vmatpush1.bf16.msra.mxu0 0
        %369 = vmatprep.subr.bf16.mxu0 0
        %370 = vmatpush1.bf16.msra.mxu0 0
        %371 = vmatprep.subr.bf16.mxu0 0
        %372 = vmatpush1.bf16.msra.mxu0 0
        %373 = vmatprep.subr.bf16.mxu0 0
        %374 = vmatpush1.bf16.msra.mxu0 0
        %375 = vmatprep.subr.bf16.mxu0 0
        %376 = vmatpush1.bf16.msra.mxu0 0
        %377 = vmatprep.mubr.bf16.mxu0 0
        %378 = vmatmul.mubr.bf16.gmra.mrb[0].mxu0 %v298
        %v379 = vpop.f32.mrb[0].mxu0
        %v380 = vadd.f32 %v258, %v379
        %v381 = vpop.f32.mrb[0].mxu0
        %v382 = vpop.f32.mrb[0].mxu0
        %v383 = vadd.f32 %v258, %v382
        %v384 = vpop.f32.mrb[0].mxu0
        %385 = vmatprep.mubr.bf16.mxu0 0
        %386 = vmatmul.mubr.bf16.gmra.mrb[0].mxu0 %v301
        %v387 = vpop.f32.mrb[0].mxu0
        %v388 = vadd.f32 %v258, %v387
        %v389 = vpop.f32.mrb[0].mxu0
        %v390 = vpop.f32.mrb[0].mxu0
        %v391 = vadd.f32 %v258, %v390
        %v392 = vpop.f32.mrb[0].mxu0
        %393 = vmatprep.mubr.bf16.mxu0 0
        %394 = vmatmul.mubr.bf16.gmra.mrb[0].mxu0 %v304
        %v395 = vpop.f32.mrb[0].mxu0
        %v396 = vadd.f32 %v258, %v395
        %v397 = vpop.f32.mrb[0].mxu0
        %v398 = vpop.f32.mrb[0].mxu0
        %v399 = vadd.f32 %v258, %v398
        %v400 = vpop.f32.mrb[0].mxu0
        %401 = vmatprep.mubr.bf16.mxu0 0
        %402 = vmatmul.mubr.bf16.gmra.mrb[0].mxu0 %v307
        %v403 = vpop.f32.mrb[0].mxu0
        %v404 = vadd.f32 %v258, %v403
        %v405 = vpop.f32.mrb[0].mxu0
        %v406 = vpop.f32.mrb[0].mxu0
        %v407 = vadd.f32 %v258, %v406
        %v408 = vpop.f32.mrb[0].mxu0
        %409 = vmatprep.mubr.bf16.mxu0 0
        %410 = vmatmul.mubr.bf16.gmra.mrb[0].mxu0 %v310
        %v411 = vpop.f32.mrb[0].mxu0
        %v412 = vadd.f32 %v258, %v411
        %v413 = vpop.f32.mrb[0].mxu0
        %v414 = vpop.f32.mrb[0].mxu0
        %v415 = vadd.f32 %v258, %v414
        %v416 = vpop.f32.mrb[0].mxu0
        %417 = vmatprep.mubr.bf16.mxu0 0
        %418 = vmatmul.mubr.bf16.gmra.mrb[0].mxu0 %v313
        %v419 = vpop.f32.mrb[0].mxu0
        %v420 = vadd.f32 %v258, %v419
        %v421 = vpop.f32.mrb[0].mxu0
        %v422 = vpop.f32.mrb[0].mxu0
        %v423 = vadd.f32 %v258, %v422
        %v424 = vpop.f32.mrb[0].mxu0
        %425 = vmatprep.mubr.bf16.mxu0 0
        %426 = vmatmul.mubr.bf16.gmra.mrb[0].mxu0 %v316
        %v427 = vpop.f32.mrb[0].mxu0
        %v428 = vadd.f32 %v258, %v427
        %v429 = vpop.f32.mrb[0].mxu0
        %v430 = vpop.f32.mrb[0].mxu0
        %v431 = vadd.f32 %v258, %v430
        %v432 = vpop.f32.mrb[0].mxu0
        %433 = vmatprep.mubr.bf16.mxu0 0
        %434 = vmatmul.mubr.bf16.gmra.mrb[0].mxu0 %v319
        %v435 = vpop.f32.mrb[0].mxu0
        %v436 = vadd.f32 %v258, %v435
        %v437 = vpop.f32.mrb[0].mxu0
        %v438 = vpop.f32.mrb[0].mxu0
        %v439 = vadd.f32 %v258, %v438
        %v440 = vpop.f32.mrb[0].mxu0
        %441 = vmatprep.mubr.bf16.mxu0 0
        %442 = vmatmul.mubr.bf16.gmra.mrb[0].mxu0 %v322
        %v443 = vpop.f32.mrb[0].mxu0
        %v444 = vadd.f32 %v258, %v443
        %v445 = vpop.f32.mrb[0].mxu0
        %v446 = vpop.f32.mrb[0].mxu0
        %v447 = vadd.f32 %v258, %v446
        %v448 = vpop.f32.mrb[0].mxu0
        %449 = vmatprep.mubr.bf16.mxu0 0
        %450 = vmatmul.mubr.bf16.gmra.mrb[0].mxu0 %v325
        %v451 = vpop.f32.mrb[0].mxu0
        %v452 = vadd.f32 %v258, %v451
        %v453 = vpop.f32.mrb[0].mxu0
        %v454 = vpop.f32.mrb[0].mxu0
        %v455 = vadd.f32 %v258, %v454
        %v456 = vpop.f32.mrb[0].mxu0
        %457 = vmatprep.mubr.bf16.mxu0 0
        %458 = vmatmul.mubr.bf16.gmra.mrb[0].mxu0 %v328
        %v459 = vpop.f32.mrb[0].mxu0
        %v460 = vadd.f32 %v258, %v459
        %v461 = vpop.f32.mrb[0].mxu0
        %v462 = vpop.f32.mrb[0].mxu0
        %v463 = vadd.f32 %v258, %v462
        %v464 = vpop.f32.mrb[0].mxu0
        %465 = vmatprep.mubr.bf16.mxu0 0
        %466 = vmatmul.mubr.bf16.gmra.mrb[0].mxu0 %v331
        %v467 = vpop.f32.mrb[0].mxu0
        %v468 = vadd.f32 %v258, %v467
        %v469 = vpop.f32.mrb[0].mxu0
        %v470 = vpop.f32.mrb[0].mxu0
        %v471 = vadd.f32 %v258, %v470
        %v472 = vpop.f32.mrb[0].mxu0
        %473 = vmatprep.mubr.bf16.mxu0 0
        %474 = vmatmul.mubr.bf16.gmra.mrb[0].mxu0 %v334
        %v475 = vpop.f32.mrb[0].mxu0
        %v476 = vadd.f32 %v258, %v475
        %v477 = vpop.f32.mrb[0].mxu0
        %v478 = vpop.f32.mrb[0].mxu0
        %v479 = vadd.f32 %v258, %v478
        %v480 = vpop.f32.mrb[0].mxu0
        %481 = vmatprep.mubr.bf16.mxu0 0
        %482 = vmatmul.mubr.bf16.gmra.mrb[0].mxu0 %v337
        %v483 = vpop.f32.mrb[0].mxu0
        %v484 = vadd.f32 %v258, %v483
        %v485 = vpop.f32.mrb[0].mxu0
        %v486 = vpop.f32.mrb[0].mxu0
        %v487 = vadd.f32 %v258, %v486
        %v488 = vpop.f32.mrb[0].mxu0
        %489 = vmatprep.mubr.bf16.mxu0 0
        %490 = vmatmul.mubr.bf16.gmra.mrb[0].mxu0 %v340
        %v491 = vpop.f32.mrb[0].mxu0
        %v492 = vadd.f32 %v258, %v491
        %v493 = vpop.f32.mrb[0].mxu0
        %v494 = vpop.f32.mrb[0].mxu0
        %v495 = vadd.f32 %v258, %v494
        %v496 = vpop.f32.mrb[0].mxu0
        %497 = vmatprep.mubr.bf16.mxu0 0
        %498 = vmatmul.mubr.bf16.gmra.mrb[0].mxu0 %v343
        %v499 = vpop.f32.mrb[0].mxu0
        %v500 = vadd.f32 %v258, %v499
        %v501 = vpop.f32.mrb[0].mxu0
        %v502 = vpop.f32.mrb[0].mxu0
        %v503 = vadd.f32 %v258, %v502
        %v504 = vpop.f32.mrb[0].mxu0
        %505 = vdwg.mxu0
        %506 = vst [vmem:[%s172] sm:$0xff] %v380
        %507 = vst [vmem:[%s172 + $0x8] sm:$0xff] %v383
        %508 = vst [vmem:[%s172 + $0x10] sm:$0xff] %v388
        %509 = vst [vmem:[%s172 + $0x18] sm:$0xff] %v391
        %510 = vst [vmem:[%s172 + $0x20] sm:$0xff] %v396
        %511 = vst [vmem:[%s172 + $0x28] sm:$0xff] %v399
        %512 = vst [vmem:[%s172 + $0x30] sm:$0xff] %v404
        %513 = vst [vmem:[%s172 + $0x38] sm:$0xff] %v407
        %514 = vst [vmem:[%s172 + $0x40] sm:$0xff] %v412
        %515 = vst [vmem:[%s172 + $0x48] sm:$0xff] %v415
        %516 = vst [vmem:[%s172 + $0x50] sm:$0xff] %v420
        %517 = vst [vmem:[%s172 + $0x58] sm:$0xff] %v423
        %518 = vst [vmem:[%s172 + $0x60] sm:$0xff] %v428
        %519 = vst [vmem:[%s172 + $0x68] sm:$0xff] %v431
        %520 = vst [vmem:[%s172 + $0x70] sm:$0xff] %v436
        %521 = vst [vmem:[%s172 + $0x78] sm:$0xff] %v439
        %522 = vst [vmem:[%s172 + $0x80] sm:$0xff] %v444
        %523 = vst [vmem:[%s172 + $0x88] sm:$0xff] %v447
        %524 = vst [vmem:[%s172 + $0x90] sm:$0xff] %v452
        %525 = vst [vmem:[%s172 + $0x98] sm:$0xff] %v455
        %526 = vst [vmem:[%s172 + $0xa0] sm:$0xff] %v460
        %527 = vst [vmem:[%s172 + $0xa8] sm:$0xff] %v463
        %528 = vst [vmem:[%s172 + $0xb0] sm:$0xff] %v468
        %529 = vst [vmem:[%s172 + $0xb8] sm:$0xff] %v471
        %530 = vst [vmem:[%s172 + $0xc0] sm:$0xff] %v476
        %531 = vst [vmem:[%s172 + $0xc8] sm:$0xff] %v479
        %532 = vst [vmem:[%s172 + $0xd0] sm:$0xff] %v484
        %533 = vst [vmem:[%s172 + $0xd8] sm:$0xff] %v487
        %534 = vst [vmem:[%s172 + $0xe0] sm:$0xff] %v492
        %535 = vst [vmem:[%s172 + $0xe8] sm:$0xff] %v495
        %536 = vst [vmem:[%s172 + $0xf0] sm:$0xff] %v500
        %537 = vst [vmem:[%s172 + $0xf8] sm:$0xff] %v503
        %s538 = sand.u32 %s90, 1
        %s539 = sand.u32 %s90, 1
        %s540 = smul.addr %s539, 256
        %s541 = scalar_lea.vmem [#allocation2], %s540
        // Predicated region
        $region33: #{rating_prediction_forward.4} parent=31 // pred_check
          %p542 = pneg %p100
        $region34: #{rating_prediction_forward.4} parent=31 // pred_check_branch
          %544 = sbr.rel (%p542) target = $region36
        $region35: #{rating_prediction_forward.4} parent=31 // pred_region
          %s545 = smul.u32 32, %s14
          %s546 = ssub.s32 48, %s545
          %p547 = scmp.lt.s32.totalorder %s546, 32
          %s548 = scalar_select %p547, %s546, 32
          %s549 = smul.u32 128, %s548
          %p550 = scmp.ne.s32.totalorder 0, %s549
          %s551 = smul.addr %s545, 8
          %s552 = scalar_lea.vmem %s3, %s551
          // Predicated region
          $region37: #{rating_prediction_forward.4} parent=35 // pred_check
            %p553 = pneg %p550
          $region38: #{rating_prediction_forward.4} parent=35 // pred_check_branch
            %555 = sbr.rel (%p553) target = $region40
          $region39: #{rating_prediction_forward.4} parent=35 // pred_region
            // Predicated region
            $region41: #{rating_prediction_forward.4} parent=39 // pred_check
              _
            $region42: #{rating_prediction_forward.4} parent=39 // pred_check_branch
              %557 = sbr.rel (0) target = $region44
            $region43: #{rating_prediction_forward.4} parent=39 // pred_region
              // Predicated region
              $region63: #{rating_prediction_forward.4} parent=43 // pred_check
                _
              $region64: #{rating_prediction_forward.4} parent=43 // pred_check_branch
                %668 = sbr.rel (0) target = $region66
              $region65: #{rating_prediction_forward.4} parent=43 // pred_region
                %s669 = sshrl.u32 %s548, 5
                // While loop
                $region67: #{rating_prediction_forward.4} parent=65 // loop_pre_header
                  _
                $region68: #{rating_prediction_forward.4} parent=65 // loop_header
                  %s671 = sphi 0, %s673
                  %p672 = scmp.ge.s32.totalorder %s671, %s669
                  %s676 = sphi 0, %s745
                  %s677 = sphi %s541, %s748
                  %s678 = sphi %s552, %s749
                $region69: #{rating_prediction_forward.4} parent=65 // loop_header_branch
                  %675 = sbr.rel (%p672) target = $region73
                $region70: #{rating_prediction_forward.4} parent=65 // loop_body
                  %v679 = vld [vmem:[%s677] sm:$0xff]
                  %680 = vst [vmem:[%s678] sm:$0xff] %v679
                  %v681 = vld [vmem:[%s677 + $0x8] sm:$0xff]
                  %682 = vst [vmem:[%s678 + $0x8] sm:$0xff] %v681
                  %v683 = vld [vmem:[%s677 + $0x10] sm:$0xff]
                  %684 = vst [vmem:[%s678 + $0x10] sm:$0xff] %v683
                  %v685 = vld [vmem:[%s677 + $0x18] sm:$0xff]
                  %686 = vst [vmem:[%s678 + $0x18] sm:$0xff] %v685
                  %v687 = vld [vmem:[%s677 + $0x20] sm:$0xff]
                  %688 = vst [vmem:[%s678 + $0x20] sm:$0xff] %v687
                  %v689 = vld [vmem:[%s677 + $0x28] sm:$0xff]
                  %690 = vst [vmem:[%s678 + $0x28] sm:$0xff] %v689
                  %v691 = vld [vmem:[%s677 + $0x30] sm:$0xff]
                  %692 = vst [vmem:[%s678 + $0x30] sm:$0xff] %v691
                  %v693 = vld [vmem:[%s677 + $0x38] sm:$0xff]
                  %694 = vst [vmem:[%s678 + $0x38] sm:$0xff] %v693
                  %v695 = vld [vmem:[%s677 + $0x40] sm:$0xff]
                  %696 = vst [vmem:[%s678 + $0x40] sm:$0xff] %v695
                  %v697 = vld [vmem:[%s677 + $0x48] sm:$0xff]
                  %698 = vst [vmem:[%s678 + $0x48] sm:$0xff] %v697
                  %v699 = vld [vmem:[%s677 + $0x50] sm:$0xff]
                  %700 = vst [vmem:[%s678 + $0x50] sm:$0xff] %v699
                  %v701 = vld [vmem:[%s677 + $0x58] sm:$0xff]
                  %702 = vst [vmem:[%s678 + $0x58] sm:$0xff] %v701
                  %v703 = vld [vmem:[%s677 + $0x60] sm:$0xff]
                  %704 = vst [vmem:[%s678 + $0x60] sm:$0xff] %v703
                  %v705 = vld [vmem:[%s677 + $0x68] sm:$0xff]
                  %706 = vst [vmem:[%s678 + $0x68] sm:$0xff] %v705
                  %v707 = vld [vmem:[%s677 + $0x70] sm:$0xff]
                  %708 = vst [vmem:[%s678 + $0x70] sm:$0xff] %v707
                  %v709 = vld [vmem:[%s677 + $0x78] sm:$0xff]
                  %710 = vst [vmem:[%s678 + $0x78] sm:$0xff] %v709
                  %v711 = vld [vmem:[%s677 + $0x80] sm:$0xff]
                  %712 = vst [vmem:[%s678 + $0x80] sm:$0xff] %v711
                  %v713 = vld [vmem:[%s677 + $0x88] sm:$0xff]
                  %714 = vst [vmem:[%s678 + $0x88] sm:$0xff] %v713
                  %v715 = vld [vmem:[%s677 + $0x90] sm:$0xff]
                  %716 = vst [vmem:[%s678 + $0x90] sm:$0xff] %v715
                  %v717 = vld [vmem:[%s677 + $0x98] sm:$0xff]
                  %718 = vst [vmem:[%s678 + $0x98] sm:$0xff] %v717
                  %v719 = vld [vmem:[%s677 + $0xa0] sm:$0xff]
                  %720 = vst [vmem:[%s678 + $0xa0] sm:$0xff] %v719
                  %v721 = vld [vmem:[%s677 + $0xa8] sm:$0xff]
                  %722 = vst [vmem:[%s678 + $0xa8] sm:$0xff] %v721
                  %v723 = vld [vmem:[%s677 + $0xb0] sm:$0xff]
                  %724 = vst [vmem:[%s678 + $0xb0] sm:$0xff] %v723
                  %v725 = vld [vmem:[%s677 + $0xb8] sm:$0xff]
                  %726 = vst [vmem:[%s678 + $0xb8] sm:$0xff] %v725
                  %v727 = vld [vmem:[%s677 + $0xc0] sm:$0xff]
                  %728 = vst [vmem:[%s678 + $0xc0] sm:$0xff] %v727
                  %v729 = vld [vmem:[%s677 + $0xc8] sm:$0xff]
                  %730 = vst [vmem:[%s678 + $0xc8] sm:$0xff] %v729
                  %v731 = vld [vmem:[%s677 + $0xd0] sm:$0xff]
                  %732 = vst [vmem:[%s678 + $0xd0] sm:$0xff] %v731
                  %v733 = vld [vmem:[%s677 + $0xd8] sm:$0xff]
                  %734 = vst [vmem:[%s678 + $0xd8] sm:$0xff] %v733
                  %v735 = vld [vmem:[%s677 + $0xe0] sm:$0xff]
                  %736 = vst [vmem:[%s678 + $0xe0] sm:$0xff] %v735
                  %v737 = vld [vmem:[%s677 + $0xe8] sm:$0xff]
                  %738 = vst [vmem:[%s678 + $0xe8] sm:$0xff] %v737
                  %v739 = vld [vmem:[%s677 + $0xf0] sm:$0xff]
                  %740 = vst [vmem:[%s678 + $0xf0] sm:$0xff] %v739
                  %v741 = vld [vmem:[%s677 + $0xf8] sm:$0xff]
                  %742 = vst [vmem:[%s678 + $0xf8] sm:$0xff] %v741
                  %s743 = sadd.s32 1, %s676
                  %p744 = scmp.ge.s32.totalorder %s743, %s669
                  %s745 = scalar_select %p744, 0, %s743
                  %s746 = smul.u32 %s745, 256
                  %s747 = smul.u32 %s745, 256
                  %s748 = scalar_lea.vmem %s541, %s746 [#allocation2]
                  %s749 = scalar_lea.vmem %s552, %s747
                $region71: #{rating_prediction_forward.4} parent=65 // loop_footer
                  %s673 = sadd.s32 %s671, 1
                $region72: #{rating_prediction_forward.4} parent=65 // loop_footer_branch
                  %670 = sbr.rel target = $region68
                $region73: #{rating_prediction_forward.4} parent=65 // loop_exit
                  _
                %s750 = sshrl.u32 %s548, 5
                %s751 = sand.u32 %s548, 31
                %s752 = smul.u32 %s750, 32
                %s753 = smul.u32 8, %s752
                %s754 = scalar_lea.vmem %s541, %s753 [#allocation2]
                %s755 = smul.u32 8, %s752
                %s756 = scalar_lea.vmem %s552, %s755
                // While loop
                $region74: #{rating_prediction_forward.4} parent=65 // loop_pre_header
                  _
                $region75: #{rating_prediction_forward.4} parent=65 // loop_header
                  %s758 = sphi 0, %s760
                  %p759 = scmp.ge.s32.totalorder %s758, %s751
                  %s763 = sphi 0, %s770
                  %s764 = sphi %s754, %s773
                  %s765 = sphi %s756, %s774
                $region76: #{rating_prediction_forward.4} parent=65 // loop_header_branch
                  %762 = sbr.rel (%p759) target = $region80
                $region77: #{rating_prediction_forward.4} parent=65 // loop_body
                  %v766 = vld [vmem:[%s764] sm:$0xff]
                  %767 = vst [vmem:[%s765] sm:$0xff] %v766
                  %s768 = sadd.s32 1, %s763
                  %p769 = scmp.ge.s32.totalorder %s768, %s751
                  %s770 = scalar_select %p769, 0, %s768
                  %s771 = smul.u32 %s770, 8
                  %s772 = smul.u32 %s770, 8
                  %s773 = scalar_lea.vmem %s754, %s771 [#allocation2]
                  %s774 = scalar_lea.vmem %s756, %s772
                $region78: #{rating_prediction_forward.4} parent=65 // loop_footer
                  %s760 = sadd.s32 %s758, 1
                $region79: #{rating_prediction_forward.4} parent=65 // loop_footer_branch
                  %757 = sbr.rel target = $region75
                $region80: #{rating_prediction_forward.4} parent=65 // loop_exit
                  _
              $region66: #{rating_prediction_forward.4} parent=43 // pred_fallthru
                _
              // Predicated region
              $region81: #{rating_prediction_forward.4} parent=43 // pred_check
                _
              $region82: #{rating_prediction_forward.4} parent=43 // pred_check_branch
                %776 = sbr.rel target = $region84
              $region83: #{rating_prediction_forward.4} parent=43 // pred_region
                _
              $region84: #{rating_prediction_forward.4} parent=43 // pred_fallthru
                _
            $region44: #{rating_prediction_forward.4} parent=39 // pred_fallthru
              _
            // Predicated region
            $region45: #{rating_prediction_forward.4} parent=39 // pred_check
              _
            $region46: #{rating_prediction_forward.4} parent=39 // pred_check_branch
              %559 = sbr.rel target = $region48
            $region47: #{rating_prediction_forward.4} parent=39 // pred_region
              %s561 = sshrl.u32 %s548, 5
              // While loop
              $region49: #{rating_prediction_forward.4} parent=47 // loop_pre_header
                _
              $region50: #{rating_prediction_forward.4} parent=47 // loop_header
                %s563 = sphi 0, %s565
                %p564 = scmp.ge.s32.totalorder %s563, %s561
                %s568 = sphi 0, %s637
                %s569 = sphi %s541, %s640
                %s570 = sphi %s552, %s641
              $region51: #{rating_prediction_forward.4} parent=47 // loop_header_branch
                %567 = sbr.rel (%p564) target = $region55
              $region52: #{rating_prediction_forward.4} parent=47 // loop_body
                %v571 = vld [vmem:[%s569] sm:$0xff]
                %572 = vst [vmem:[%s570] sm:$0xff] %v571
                %v573 = vld [vmem:[%s569 + $0x8] sm:$0xff]
                %574 = vst [vmem:[%s570 + $0x8] sm:$0xff] %v573
                %v575 = vld [vmem:[%s569 + $0x10] sm:$0xff]
                %576 = vst [vmem:[%s570 + $0x10] sm:$0xff] %v575
                %v577 = vld [vmem:[%s569 + $0x18] sm:$0xff]
                %578 = vst [vmem:[%s570 + $0x18] sm:$0xff] %v577
                %v579 = vld [vmem:[%s569 + $0x20] sm:$0xff]
                %580 = vst [vmem:[%s570 + $0x20] sm:$0xff] %v579
                %v581 = vld [vmem:[%s569 + $0x28] sm:$0xff]
                %582 = vst [vmem:[%s570 + $0x28] sm:$0xff] %v581
                %v583 = vld [vmem:[%s569 + $0x30] sm:$0xff]
                %584 = vst [vmem:[%s570 + $0x30] sm:$0xff] %v583
                %v585 = vld [vmem:[%s569 + $0x38] sm:$0xff]
                %586 = vst [vmem:[%s570 + $0x38] sm:$0xff] %v585
                %v587 = vld [vmem:[%s569 + $0x40] sm:$0xff]
                %588 = vst [vmem:[%s570 + $0x40] sm:$0xff] %v587
                %v589 = vld [vmem:[%s569 + $0x48] sm:$0xff]
                %590 = vst [vmem:[%s570 + $0x48] sm:$0xff] %v589
                %v591 = vld [vmem:[%s569 + $0x50] sm:$0xff]
                %592 = vst [vmem:[%s570 + $0x50] sm:$0xff] %v591
                %v593 = vld [vmem:[%s569 + $0x58] sm:$0xff]
                %594 = vst [vmem:[%s570 + $0x58] sm:$0xff] %v593
                %v595 = vld [vmem:[%s569 + $0x60] sm:$0xff]
                %596 = vst [vmem:[%s570 + $0x60] sm:$0xff] %v595
                %v597 = vld [vmem:[%s569 + $0x68] sm:$0xff]
                %598 = vst [vmem:[%s570 + $0x68] sm:$0xff] %v597
                %v599 = vld [vmem:[%s569 + $0x70] sm:$0xff]
                %600 = vst [vmem:[%s570 + $0x70] sm:$0xff] %v599
                %v601 = vld [vmem:[%s569 + $0x78] sm:$0xff]
                %602 = vst [vmem:[%s570 + $0x78] sm:$0xff] %v601
                %v603 = vld [vmem:[%s569 + $0x80] sm:$0xff]
                %604 = vst [vmem:[%s570 + $0x80] sm:$0xff] %v603
                %v605 = vld [vmem:[%s569 + $0x88] sm:$0xff]
                %606 = vst [vmem:[%s570 + $0x88] sm:$0xff] %v605
                %v607 = vld [vmem:[%s569 + $0x90] sm:$0xff]
                %608 = vst [vmem:[%s570 + $0x90] sm:$0xff] %v607
                %v609 = vld [vmem:[%s569 + $0x98] sm:$0xff]
                %610 = vst [vmem:[%s570 + $0x98] sm:$0xff] %v609
                %v611 = vld [vmem:[%s569 + $0xa0] sm:$0xff]
                %612 = vst [vmem:[%s570 + $0xa0] sm:$0xff] %v611
                %v613 = vld [vmem:[%s569 + $0xa8] sm:$0xff]
                %614 = vst [vmem:[%s570 + $0xa8] sm:$0xff] %v613
                %v615 = vld [vmem:[%s569 + $0xb0] sm:$0xff]
                %616 = vst [vmem:[%s570 + $0xb0] sm:$0xff] %v615
                %v617 = vld [vmem:[%s569 + $0xb8] sm:$0xff]
                %618 = vst [vmem:[%s570 + $0xb8] sm:$0xff] %v617
                %v619 = vld [vmem:[%s569 + $0xc0] sm:$0xff]
                %620 = vst [vmem:[%s570 + $0xc0] sm:$0xff] %v619
                %v621 = vld [vmem:[%s569 + $0xc8] sm:$0xff]
                %622 = vst [vmem:[%s570 + $0xc8] sm:$0xff] %v621
                %v623 = vld [vmem:[%s569 + $0xd0] sm:$0xff]
                %624 = vst [vmem:[%s570 + $0xd0] sm:$0xff] %v623
                %v625 = vld [vmem:[%s569 + $0xd8] sm:$0xff]
                %626 = vst [vmem:[%s570 + $0xd8] sm:$0xff] %v625
                %v627 = vld [vmem:[%s569 + $0xe0] sm:$0xff]
                %628 = vst [vmem:[%s570 + $0xe0] sm:$0xff] %v627
                %v629 = vld [vmem:[%s569 + $0xe8] sm:$0xff]
                %630 = vst [vmem:[%s570 + $0xe8] sm:$0xff] %v629
                %v631 = vld [vmem:[%s569 + $0xf0] sm:$0xff]
                %632 = vst [vmem:[%s570 + $0xf0] sm:$0xff] %v631
                %v633 = vld [vmem:[%s569 + $0xf8] sm:$0xff]
                %634 = vst [vmem:[%s570 + $0xf8] sm:$0xff] %v633
                %s635 = sadd.s32 1, %s568
                %p636 = scmp.ge.s32.totalorder %s635, %s561
                %s637 = scalar_select %p636, 0, %s635
                %s638 = smul.u32 %s637, 256
                %s639 = smul.u32 %s637, 256
                %s640 = scalar_lea.vmem %s541, %s638 [#allocation2]
                %s641 = scalar_lea.vmem %s552, %s639
              $region53: #{rating_prediction_forward.4} parent=47 // loop_footer
                %s565 = sadd.s32 %s563, 1
              $region54: #{rating_prediction_forward.4} parent=47 // loop_footer_branch
                %562 = sbr.rel target = $region50
              $region55: #{rating_prediction_forward.4} parent=47 // loop_exit
                _
              %s642 = sshrl.u32 %s548, 5
              %s643 = sand.u32 %s548, 31
              %s644 = smul.u32 %s642, 32
              %s645 = smul.u32 8, %s644
              %s646 = scalar_lea.vmem %s541, %s645 [#allocation2]
              %s647 = smul.u32 8, %s644
              %s648 = scalar_lea.vmem %s552, %s647
              // While loop
              $region56: #{rating_prediction_forward.4} parent=47 // loop_pre_header
                _
              $region57: #{rating_prediction_forward.4} parent=47 // loop_header
                %s650 = sphi 0, %s652
                %p651 = scmp.ge.s32.totalorder %s650, %s643
                %s655 = sphi 0, %s662
                %s656 = sphi %s646, %s665
                %s657 = sphi %s648, %s666
              $region58: #{rating_prediction_forward.4} parent=47 // loop_header_branch
                %654 = sbr.rel (%p651) target = $region62
              $region59: #{rating_prediction_forward.4} parent=47 // loop_body
                %v658 = vld [vmem:[%s656] sm:$0xff]
                %659 = vst [vmem:[%s657] sm:$0xff] %v658
                %s660 = sadd.s32 1, %s655
                %p661 = scmp.ge.s32.totalorder %s660, %s643
                %s662 = scalar_select %p661, 0, %s660
                %s663 = smul.u32 %s662, 8
                %s664 = smul.u32 %s662, 8
                %s665 = scalar_lea.vmem %s646, %s663 [#allocation2]
                %s666 = scalar_lea.vmem %s648, %s664
              $region60: #{rating_prediction_forward.4} parent=47 // loop_footer
                %s652 = sadd.s32 %s650, 1
              $region61: #{rating_prediction_forward.4} parent=47 // loop_footer_branch
                %649 = sbr.rel target = $region57
              $region62: #{rating_prediction_forward.4} parent=47 // loop_exit
                _
            $region48: #{rating_prediction_forward.4} parent=39 // pred_fallthru
              _
          $region40: #{rating_prediction_forward.4} parent=35 // pred_fallthru
            _
          %777 = vnop
        $region36: #{rating_prediction_forward.4} parent=31 // pred_fallthru
          _
      $region32: #{rating_prediction_forward.4} parent=5 // pred_fallthru
        _
      %p778 = scmp.le.s32.totalorder 2, %s9
      // Predicated region
      $region85: #{rating_prediction_forward.4} parent=5 // pred_check
        %p779 = pneg %p778
      $region86: #{rating_prediction_forward.4} parent=5 // pred_check_branch
        %781 = sbr.rel (%p779) target = $region88
      $region87: #{rating_prediction_forward.4} parent=5 // pred_region
        %s782 = ssub.s32 %s9, 2
        // Predicated region
        $region89: #{rating_prediction_forward.4} parent=87 // pred_check
          %p783 = pneg %p106
        $region90: #{rating_prediction_forward.4} parent=87 // pred_check_branch
          %785 = sbr.rel (%p783) target = $region92
        $region91: #{rating_prediction_forward.4} parent=87 // pred_region
          %s786 = sand.u32 %s91, 1
          %s787 = sand.u32 %s91, 1
          %s788 = smul.addr %s787, 256
          %s789 = scalar_lea.vmem [#allocation2], %s788
        $region92: #{rating_prediction_forward.4} parent=87 // pred_fallthru
          _
      $region88: #{rating_prediction_forward.4} parent=5 // pred_fallthru
        _
    $region6: #{rating_prediction_forward.4} parent=1 // loop_footer
      %s13 = sadd.s32 1, %s9
    $region7: #{rating_prediction_forward.4} parent=1 // loop_footer_branch
      %8 = sbr.rel target = $region3
    $region8: #{rating_prediction_forward.4} parent=1 // loop_exit
      _

// kernel: rating_prediction_forward.5
$region0: #{rating_prediction_forward.5}
  #allocation0 [shape = 'u32[]', space=smem, size = 0x4, offset = 0x4, fixed_abs, tag = 'smem constant byte address 0x4 - core index']
  #allocation1 [shape = 'u32[144,128]{1,0:T(1,128)}', space=vmem, size = 0x12000, scoped, tag = 'internal scratch']
  %s0 = inlined_call_operand.vmem [shape: f32[1024,128], index: 0, kind: input, shape index: {}]
  %s1 = inlined_call_operand.vmem [shape: f32[1024,128], index: 1, kind: input, shape index: {}]
  %s2 = inlined_call_operand.vmem [shape: f32[1,1024], index: 2, kind: output, shape index: {}]
  %s3 = sld [smem:[#allocation0]]
  $region41: #{rating_prediction_forward.5} parent=0
    _
  %s5 = ssub.s32 1, %s3
  %s6 = scalar_select 0, %s5, %s3
  loop: start=0, step=1, limit=4
  $region2: #{rating_prediction_forward.5} parent=0 // loop_pre_header
    _
  $region3: #{rating_prediction_forward.5} parent=0 // loop_header
    %s8 = sphi 0, %s12
    %p9 = scmp.ge.s32.totalorder %s8, 4
    %s18 = sphi 0, %s20
    %s21 = sphi 0, %s18
    %s22 = sphi 0, %s21
    %s38 = sphi 0, %s22
    %s44 = sphi 0, %s46
    %s47 = sphi 0, %s44
    %s48 = sphi 0, %s47
    %s64 = sphi 0, %s48
    %s70 = sphi 0, %s72
    %s73 = sphi 0, %s70
    %s74 = sphi 0, %s73
    %s90 = sphi 0, %s74
  $region4: #{rating_prediction_forward.5} parent=0 // loop_header_branch
    %11 = sbr.rel (%p9) target = $region8
  $region5: #{rating_prediction_forward.5} parent=0 // loop_body
    %s13 = ssub.s32 %s8, 1
    %s14 = ssub.s32 %s8, 2
    %s15 = sadd.s32 %s8, 1
    %s16 = ssub.s32 %s8, %s15
    %p17 = scmp.eq.s32.totalorder %s16, 0
    %s19 = sadd.s32 %s18, 1
    %s20 = scalar_select %p17, %s18, %s19
    %p23 = pneg %p17
    %p24 = scmp.eq.s32.totalorder %s8, 1
    %p25 = por %p23, %p24
    %p26 = scmp.ne.s32.totalorder %s18, %s21
    %p27 = scmp.eq.s32.totalorder %s8, 0
    %p28 = por %p26, %p27
    %p29 = scmp.ne.s32.totalorder %s18, %s21
    %p30 = scmp.eq.s32.totalorder %s13, 1
    %p31 = por %p29, %p30
    %p32 = scmp.ne.s32.totalorder %s21, %s22
    %p33 = scmp.eq.s32.totalorder %s13, 0
    %p34 = por %p32, %p33
    %p35 = scmp.ne.s32.totalorder %s21, %s22
    %p36 = scmp.eq.s32.totalorder %s14, 1
    %p37 = por %p35, %p36
    %p39 = scmp.ne.s32.totalorder %s22, %s38
    %p40 = scmp.eq.s32.totalorder %s14, 0
    %p41 = por %p39, %p40
    %s42 = ssub.s32 %s8, %s15
    %p43 = scmp.eq.s32.totalorder %s42, 0
    %s45 = sadd.s32 %s44, 1
    %s46 = scalar_select %p43, %s44, %s45
    %p49 = pneg %p43
    %p50 = scmp.eq.s32.totalorder %s8, 1
    %p51 = por %p49, %p50
    %p52 = scmp.ne.s32.totalorder %s44, %s47
    %p53 = scmp.eq.s32.totalorder %s8, 0
    %p54 = por %p52, %p53
    %p55 = scmp.ne.s32.totalorder %s44, %s47
    %p56 = scmp.eq.s32.totalorder %s13, 1
    %p57 = por %p55, %p56
    %p58 = scmp.ne.s32.totalorder %s47, %s48
    %p59 = scmp.eq.s32.totalorder %s13, 0
    %p60 = por %p58, %p59
    %p61 = scmp.ne.s32.totalorder %s47, %s48
    %p62 = scmp.eq.s32.totalorder %s14, 1
    %p63 = por %p61, %p62
    %p65 = scmp.ne.s32.totalorder %s48, %s64
    %p66 = scmp.eq.s32.totalorder %s14, 0
    %p67 = por %p65, %p66
    %s68 = ssub.s32 %s8, %s15
    %p69 = scmp.eq.s32.totalorder %s68, 0
    %s71 = sadd.s32 %s70, 1
    %s72 = scalar_select %p69, %s70, %s71
    %p75 = pneg %p69
    %p76 = scmp.eq.s32.totalorder %s8, 1
    %p77 = por %p75, %p76
    %p78 = scmp.ne.s32.totalorder %s70, %s73
    %p79 = scmp.eq.s32.totalorder %s8, 0
    %p80 = por %p78, %p79
    %p81 = scmp.ne.s32.totalorder %s70, %s73
    %p82 = scmp.eq.s32.totalorder %s13, 1
    %p83 = por %p81, %p82
    %p84 = scmp.ne.s32.totalorder %s73, %s74
    %p85 = scmp.eq.s32.totalorder %s13, 0
    %p86 = por %p84, %p85
    %p87 = scmp.ne.s32.totalorder %s73, %s74
    %p88 = scmp.eq.s32.totalorder %s14, 1
    %p89 = por %p87, %p88
    %p91 = scmp.ne.s32.totalorder %s74, %s90
    %p92 = scmp.eq.s32.totalorder %s14, 0
    %p93 = por %p91, %p92
    %p94 = scmp.le.s32.totalorder 1, %s8
    %p95 = scmp.lt.s32.totalorder %s8, 3
    %p96 = pnand %p94, %p95
    %p97 = pneg %p96
    // Predicated region
    $region9: #{rating_prediction_forward.5} parent=5 // pred_check
      _
    $region10: #{rating_prediction_forward.5} parent=5 // pred_check_branch
      %99 = sbr.rel (%p96) target = $region12
    $region11: #{rating_prediction_forward.5} parent=5 // pred_region
      %s100 = ssub.s32 %s8, 1
    $region12: #{rating_prediction_forward.5} parent=5 // pred_fallthru
      _
    %p101 = scmp.lt.s32.totalorder %s8, 2
    // Predicated region
    $region13: #{rating_prediction_forward.5} parent=5 // pred_check
      %p102 = pneg %p101
    $region14: #{rating_prediction_forward.5} parent=5 // pred_check_branch
      %104 = sbr.rel (%p102) target = $region16
    $region15: #{rating_prediction_forward.5} parent=5 // pred_region
      // Predicated region
      $region17: #{rating_prediction_forward.5} parent=15 // pred_check
        %p105 = pneg %p28
      $region18: #{rating_prediction_forward.5} parent=15 // pred_check_branch
        %107 = sbr.rel (%p105) target = $region20
      $region19: #{rating_prediction_forward.5} parent=15 // pred_region
        %s108 = smul.u32 64, %s8
        %p109 = scmp.lt.s32.totalorder %s108, 127
        %s110 = scalar_select %p109, %s108, 127
        %s111 = smul.addr %s110, 8
        %s112 = scalar_lea.vmem %s0, %s111
        %s113 = smul.u32 64, %s8
      $region20: #{rating_prediction_forward.5} parent=15 // pred_fallthru
        _
      // Predicated region
      $region21: #{rating_prediction_forward.5} parent=15 // pred_check
        %p114 = pneg %p54
      $region22: #{rating_prediction_forward.5} parent=15 // pred_check_branch
        %116 = sbr.rel (%p114) target = $region24
      $region23: #{rating_prediction_forward.5} parent=15 // pred_region
        %s117 = smul.u32 64, %s8
        %p118 = scmp.lt.s32.totalorder %s117, 127
        %s119 = scalar_select %p118, %s117, 127
        %s120 = smul.addr %s119, 8
        %s121 = scalar_lea.vmem %s1, %s120
        %s122 = smul.u32 64, %s8
      $region24: #{rating_prediction_forward.5} parent=15 // pred_fallthru
        _
    $region16: #{rating_prediction_forward.5} parent=5 // pred_fallthru
      _
    %p123 = scmp.le.s32.totalorder 1, %s8
    %p124 = scmp.lt.s32.totalorder %s8, 3
    %p125 = pnand %p123, %p124
    %p126 = pneg %p125
    // Predicated region
    $region25: #{rating_prediction_forward.5} parent=5 // pred_check
      _
    $region26: #{rating_prediction_forward.5} parent=5 // pred_check_branch
      %128 = sbr.rel (%p125) target = $region28
    $region27: #{rating_prediction_forward.5} parent=5 // pred_region
      %s129 = ssub.s32 %s8, 1
      %s130 = smul.u32 64, %s13
      %p131 = scmp.lt.s32.totalorder %s130, 127
      %s132 = scalar_select %p131, %s130, 127
      %s133 = smul.addr %s132, 8
      %s134 = scalar_lea.vmem %s0, %s133
      %p135 = pneg %p34
      %p136 = pneg %p31
      %s137 = smul.u32 64, %s13
      %p138 = scmp.lt.s32.totalorder %s137, 127
      %s139 = scalar_select %p138, %s137, 127
      %s140 = smul.addr %s139, 8
      %s141 = scalar_lea.vmem %s1, %s140
      %p142 = pneg %p60
      %p143 = pneg %p57
      %p144 = pneg %p86
      %p145 = pneg %p83
      %s146 = smul.u32 4, %s13
      %p147 = scmp.lt.s32.totalorder %s146, 7
      %s148 = scalar_select %p147, %s146, 7
      %s149 = scalar_lea.vmem %s2, %s148
      %s150 = smul.u32 64, %s13
      %p151 = scmp.lt.s32.totalorder %s150, 127
      %s152 = scalar_select %p151, %s150, 127
      %s153 = smul.addr %s152, 8
      %s154 = scalar_lea.vmem %s0, %s153
      %s155 = smul.u32 64, %s13
      %s156 = smul.u32 64, %s13
      %p157 = scmp.lt.s32.totalorder %s156, 127
      %s158 = scalar_select %p157, %s156, 127
      %s159 = smul.addr %s158, 8
      %s160 = scalar_lea.vmem %s1, %s159
      %s161 = smul.u32 64, %s13
      %s162 = smul.u32 4, %s13
      %p163 = scmp.lt.s32.totalorder %s162, 7
      %s164 = scalar_select %p163, %s162, 7
      %s165 = scalar_lea.vmem %s2, %s164
      %s166 = smul.u32 4, %s13
      %v167 = vld [vmem:[%s154] sm:$0xff]
      %v168 = vld [vmem:[%s154 + $0x8] sm:$0xff]
      %v169 = vld [vmem:[%s154 + $0x10] sm:$0xff]
      %v170 = vld [vmem:[%s154 + $0x18] sm:$0xff]
      %v171 = vld [vmem:[%s154 + $0x20] sm:$0xff]
      %v172 = vld [vmem:[%s154 + $0x28] sm:$0xff]
      %v173 = vld [vmem:[%s154 + $0x30] sm:$0xff]
      %v174 = vld [vmem:[%s154 + $0x38] sm:$0xff]
      %v175 = vld [vmem:[%s154 + $0x40] sm:$0xff]
      %v176 = vld [vmem:[%s154 + $0x48] sm:$0xff]
      %v177 = vld [vmem:[%s154 + $0x50] sm:$0xff]
      %v178 = vld [vmem:[%s154 + $0x58] sm:$0xff]
      %v179 = vld [vmem:[%s154 + $0x60] sm:$0xff]
      %v180 = vld [vmem:[%s154 + $0x68] sm:$0xff]
      %v181 = vld [vmem:[%s154 + $0x70] sm:$0xff]
      %v182 = vld [vmem:[%s154 + $0x78] sm:$0xff]
      %v183 = vld [vmem:[%s154 + $0x80] sm:$0xff]
      %v184 = vld [vmem:[%s154 + $0x88] sm:$0xff]
      %v185 = vld [vmem:[%s154 + $0x90] sm:$0xff]
      %v186 = vld [vmem:[%s154 + $0x98] sm:$0xff]
      %v187 = vld [vmem:[%s154 + $0xa0] sm:$0xff]
      %v188 = vld [vmem:[%s154 + $0xa8] sm:$0xff]
      %v189 = vld [vmem:[%s154 + $0xb0] sm:$0xff]
      %v190 = vld [vmem:[%s154 + $0xb8] sm:$0xff]
      %v191 = vld [vmem:[%s154 + $0xc0] sm:$0xff]
      %v192 = vld [vmem:[%s154 + $0xc8] sm:$0xff]
      %v193 = vld [vmem:[%s154 + $0xd0] sm:$0xff]
      %v194 = vld [vmem:[%s154 + $0xd8] sm:$0xff]
      %v195 = vld [vmem:[%s154 + $0xe0] sm:$0xff]
      %v196 = vld [vmem:[%s154 + $0xe8] sm:$0xff]
      %v197 = vld [vmem:[%s154 + $0xf0] sm:$0xff]
      %v198 = vld [vmem:[%s154 + $0xf8] sm:$0xff]
      %v199 = vld [vmem:[%s154 + $0x100] sm:$0xff]
      %v200 = vld [vmem:[%s154 + $0x108] sm:$0xff]
      %v201 = vld [vmem:[%s154 + $0x110] sm:$0xff]
      %v202 = vld [vmem:[%s154 + $0x118] sm:$0xff]
      %v203 = vld [vmem:[%s154 + $0x120] sm:$0xff]
      %v204 = vld [vmem:[%s154 + $0x128] sm:$0xff]
      %v205 = vld [vmem:[%s154 + $0x130] sm:$0xff]
      %v206 = vld [vmem:[%s154 + $0x138] sm:$0xff]
      %v207 = vld [vmem:[%s154 + $0x140] sm:$0xff]
      %v208 = vld [vmem:[%s154 + $0x148] sm:$0xff]
      %v209 = vld [vmem:[%s154 + $0x150] sm:$0xff]
      %v210 = vld [vmem:[%s154 + $0x158] sm:$0xff]
      %v211 = vld [vmem:[%s154 + $0x160] sm:$0xff]
      %v212 = vld [vmem:[%s154 + $0x168] sm:$0xff]
      %v213 = vld [vmem:[%s154 + $0x170] sm:$0xff]
      %v214 = vld [vmem:[%s154 + $0x178] sm:$0xff]
      %v215 = vld [vmem:[%s154 + $0x180] sm:$0xff]
      %v216 = vld [vmem:[%s154 + $0x188] sm:$0xff]
      %v217 = vld [vmem:[%s154 + $0x190] sm:$0xff]
      %v218 = vld [vmem:[%s154 + $0x198] sm:$0xff]
      %v219 = vld [vmem:[%s154 + $0x1a0] sm:$0xff]
      %v220 = vld [vmem:[%s154 + $0x1a8] sm:$0xff]
      %v221 = vld [vmem:[%s154 + $0x1b0] sm:$0xff]
      %v222 = vld [vmem:[%s154 + $0x1b8] sm:$0xff]
      %v223 = vld [vmem:[%s154 + $0x1c0] sm:$0xff]
      %v224 = vld [vmem:[%s154 + $0x1c8] sm:$0xff]
      %v225 = vld [vmem:[%s154 + $0x1d0] sm:$0xff]
      %v226 = vld [vmem:[%s154 + $0x1d8] sm:$0xff]
      %v227 = vld [vmem:[%s154 + $0x1e0] sm:$0xff]
      %v228 = vld [vmem:[%s154 + $0x1e8] sm:$0xff]
      %v229 = vld [vmem:[%s154 + $0x1f0] sm:$0xff]
      %v230 = vld [vmem:[%s154 + $0x1f8] sm:$0xff]
      %v231 = vld [vmem:[%s160] sm:$0xff]
      %v232 = vld [vmem:[%s160 + $0x8] sm:$0xff]
      %v233 = vld [vmem:[%s160 + $0x10] sm:$0xff]
      %v234 = vld [vmem:[%s160 + $0x18] sm:$0xff]
      %v235 = vld [vmem:[%s160 + $0x20] sm:$0xff]
      %v236 = vld [vmem:[%s160 + $0x28] sm:$0xff]
      %v237 = vld [vmem:[%s160 + $0x30] sm:$0xff]
      %v238 = vld [vmem:[%s160 + $0x38] sm:$0xff]
      %v239 = vld [vmem:[%s160 + $0x40] sm:$0xff]
      %v240 = vld [vmem:[%s160 + $0x48] sm:$0xff]
      %v241 = vld [vmem:[%s160 + $0x50] sm:$0xff]
      %v242 = vld [vmem:[%s160 + $0x58] sm:$0xff]
      %v243 = vld [vmem:[%s160 + $0x60] sm:$0xff]
      %v244 = vld [vmem:[%s160 + $0x68] sm:$0xff]
      %v245 = vld [vmem:[%s160 + $0x70] sm:$0xff]
      %v246 = vld [vmem:[%s160 + $0x78] sm:$0xff]
      %v247 = vld [vmem:[%s160 + $0x80] sm:$0xff]
      %v248 = vld [vmem:[%s160 + $0x88] sm:$0xff]
      %v249 = vld [vmem:[%s160 + $0x90] sm:$0xff]
      %v250 = vld [vmem:[%s160 + $0x98] sm:$0xff]
      %v251 = vld [vmem:[%s160 + $0xa0] sm:$0xff]
      %v252 = vld [vmem:[%s160 + $0xa8] sm:$0xff]
      %v253 = vld [vmem:[%s160 + $0xb0] sm:$0xff]
      %v254 = vld [vmem:[%s160 + $0xb8] sm:$0xff]
      %v255 = vld [vmem:[%s160 + $0xc0] sm:$0xff]
      %v256 = vld [vmem:[%s160 + $0xc8] sm:$0xff]
      %v257 = vld [vmem:[%s160 + $0xd0] sm:$0xff]
      %v258 = vld [vmem:[%s160 + $0xd8] sm:$0xff]
      %v259 = vld [vmem:[%s160 + $0xe0] sm:$0xff]
      %v260 = vld [vmem:[%s160 + $0xe8] sm:$0xff]
      %v261 = vld [vmem:[%s160 + $0xf0] sm:$0xff]
      %v262 = vld [vmem:[%s160 + $0xf8] sm:$0xff]
      %v263 = vld [vmem:[%s160 + $0x100] sm:$0xff]
      %v264 = vld [vmem:[%s160 + $0x108] sm:$0xff]
      %v265 = vld [vmem:[%s160 + $0x110] sm:$0xff]
      %v266 = vld [vmem:[%s160 + $0x118] sm:$0xff]
      %v267 = vld [vmem:[%s160 + $0x120] sm:$0xff]
      %v268 = vld [vmem:[%s160 + $0x128] sm:$0xff]
      %v269 = vld [vmem:[%s160 + $0x130] sm:$0xff]
      %v270 = vld [vmem:[%s160 + $0x138] sm:$0xff]
      %v271 = vld [vmem:[%s160 + $0x140] sm:$0xff]
      %v272 = vld [vmem:[%s160 + $0x148] sm:$0xff]
      %v273 = vld [vmem:[%s160 + $0x150] sm:$0xff]
      %v274 = vld [vmem:[%s160 + $0x158] sm:$0xff]
      %v275 = vld [vmem:[%s160 + $0x160] sm:$0xff]
      %v276 = vld [vmem:[%s160 + $0x168] sm:$0xff]
      %v277 = vld [vmem:[%s160 + $0x170] sm:$0xff]
      %v278 = vld [vmem:[%s160 + $0x178] sm:$0xff]
      %v279 = vld [vmem:[%s160 + $0x180] sm:$0xff]
      %v280 = vld [vmem:[%s160 + $0x188] sm:$0xff]
      %v281 = vld [vmem:[%s160 + $0x190] sm:$0xff]
      %v282 = vld [vmem:[%s160 + $0x198] sm:$0xff]
      %v283 = vld [vmem:[%s160 + $0x1a0] sm:$0xff]
      %v284 = vld [vmem:[%s160 + $0x1a8] sm:$0xff]
      %v285 = vld [vmem:[%s160 + $0x1b0] sm:$0xff]
      %v286 = vld [vmem:[%s160 + $0x1b8] sm:$0xff]
      %v287 = vld [vmem:[%s160 + $0x1c0] sm:$0xff]
      %v288 = vld [vmem:[%s160 + $0x1c8] sm:$0xff]
      %v289 = vld [vmem:[%s160 + $0x1d0] sm:$0xff]
      %v290 = vld [vmem:[%s160 + $0x1d8] sm:$0xff]
      %v291 = vld [vmem:[%s160 + $0x1e0] sm:$0xff]
      %v292 = vld [vmem:[%s160 + $0x1e8] sm:$0xff]
      %v293 = vld [vmem:[%s160 + $0x1f0] sm:$0xff]
      %v294 = vld [vmem:[%s160 + $0x1f8] sm:$0xff]
      %v295 = vmul.f32 %v167, %v231
      %v296 = vmul.f32 %v168, %v232
      %v297 = vmul.f32 %v169, %v233
      %v298 = vmul.f32 %v170, %v234
      %v299 = vmul.f32 %v171, %v235
      %v300 = vmul.f32 %v172, %v236
      %v301 = vmul.f32 %v173, %v237
      %v302 = vmul.f32 %v174, %v238
      %v303 = vmul.f32 %v175, %v239
      %v304 = vmul.f32 %v176, %v240
      %v305 = vmul.f32 %v177, %v241
      %v306 = vmul.f32 %v178, %v242
      %v307 = vmul.f32 %v179, %v243
      %v308 = vmul.f32 %v180, %v244
      %v309 = vmul.f32 %v181, %v245
      %v310 = vmul.f32 %v182, %v246
      %v311 = vmul.f32 %v183, %v247
      %v312 = vmul.f32 %v184, %v248
      %v313 = vmul.f32 %v185, %v249
      %v314 = vmul.f32 %v186, %v250
      %v315 = vmul.f32 %v187, %v251
      %v316 = vmul.f32 %v188, %v252
      %v317 = vmul.f32 %v189, %v253
      %v318 = vmul.f32 %v190, %v254
      %v319 = vmul.f32 %v191, %v255
      %v320 = vmul.f32 %v192, %v256
      %v321 = vmul.f32 %v193, %v257
      %v322 = vmul.f32 %v194, %v258
      %v323 = vmul.f32 %v195, %v259
      %v324 = vmul.f32 %v196, %v260
      %v325 = vmul.f32 %v197, %v261
      %v326 = vmul.f32 %v198, %v262
      %v327 = vmul.f32 %v199, %v263
      %v328 = vmul.f32 %v200, %v264
      %v329 = vmul.f32 %v201, %v265
      %v330 = vmul.f32 %v202, %v266
      %v331 = vmul.f32 %v203, %v267
      %v332 = vmul.f32 %v204, %v268
      %v333 = vmul.f32 %v205, %v269
      %v334 = vmul.f32 %v206, %v270
      %v335 = vmul.f32 %v207, %v271
      %v336 = vmul.f32 %v208, %v272
      %v337 = vmul.f32 %v209, %v273
      %v338 = vmul.f32 %v210, %v274
      %v339 = vmul.f32 %v211, %v275
      %v340 = vmul.f32 %v212, %v276
      %v341 = vmul.f32 %v213, %v277
      %v342 = vmul.f32 %v214, %v278
      %v343 = vmul.f32 %v215, %v279
      %v344 = vmul.f32 %v216, %v280
      %v345 = vmul.f32 %v217, %v281
      %v346 = vmul.f32 %v218, %v282
      %v347 = vmul.f32 %v219, %v283
      %v348 = vmul.f32 %v220, %v284
      %v349 = vmul.f32 %v221, %v285
      %v350 = vmul.f32 %v222, %v286
      %v351 = vmul.f32 %v223, %v287
      %v352 = vmul.f32 %v224, %v288
      %v353 = vmul.f32 %v225, %v289
      %v354 = vmul.f32 %v226, %v290
      %v355 = vmul.f32 %v227, %v291
      %v356 = vmul.f32 %v228, %v292
      %v357 = vmul.f32 %v229, %v293
      %v358 = vmul.f32 %v230, %v294
      %359 = vxpose.xlu0.b32.start [1/16] %v295, 128
      %360 = vxpose.xlu0.b32.cont [2/16] %v296, 128
      %361 = vxpose.xlu0.b32.cont [3/16] %v297, 128
      %362 = vxpose.xlu0.b32.cont [4/16] %v298, 128
      %363 = vxpose.xlu0.b32.cont [5/16] %v299, 128
      %364 = vxpose.xlu0.b32.cont [6/16] %v300, 128
      %365 = vxpose.xlu0.b32.cont [7/16] %v301, 128
      %366 = vxpose.xlu0.b32.cont [8/16] %v302, 128
      %367 = vxpose.xlu0.b32.cont [9/16] %v303, 128
      %368 = vxpose.xlu0.b32.cont [10/16] %v304, 128
      %369 = vxpose.xlu0.b32.cont [11/16] %v305, 128
      %370 = vxpose.xlu0.b32.cont [12/16] %v306, 128
      %371 = vxpose.xlu0.b32.cont [13/16] %v307, 128
      %372 = vxpose.xlu0.b32.cont [14/16] %v308, 128
      %373 = vxpose.xlu0.b32.cont [15/16] %v309, 128
      %374 = vxpose.xlu0.b32.end [16/16] %v310, 128
      %v375 = vpop.trf.xlu0
      %v376 = vpop.trf.xlu0
      %v377 = vpop.trf.xlu0
      %v378 = vpop.trf.xlu0
      %v379 = vpop.trf.xlu0
      %v380 = vpop.trf.xlu0
      %v381 = vpop.trf.xlu0
      %v382 = vpop.trf.xlu0
      %v383 = vpop.trf.xlu0
      %v384 = vpop.trf.xlu0
      %v385 = vpop.trf.xlu0
      %v386 = vpop.trf.xlu0
      %v387 = vpop.trf.xlu0
      %v388 = vpop.trf.xlu0
      %v389 = vpop.trf.xlu0
      %v390 = vpop.trf.xlu0
      %391 = vxpose.xlu0.b32.start [1/16] %v311, 128
      %392 = vxpose.xlu0.b32.cont [2/16] %v312, 128
      %393 = vxpose.xlu0.b32.cont [3/16] %v313, 128
      %394 = vxpose.xlu0.b32.cont [4/16] %v314, 128
      %395 = vxpose.xlu0.b32.cont [5/16] %v315, 128
      %396 = vxpose.xlu0.b32.cont [6/16] %v316, 128
      %397 = vxpose.xlu0.b32.cont [7/16] %v317, 128
      %398 = vxpose.xlu0.b32.cont [8/16] %v318, 128
      %399 = vxpose.xlu0.b32.cont [9/16] %v319, 128
      %400 = vxpose.xlu0.b32.cont [10/16] %v320, 128
      %401 = vxpose.xlu0.b32.cont [11/16] %v321, 128
      %402 = vxpose.xlu0.b32.cont [12/16] %v322, 128
      %403 = vxpose.xlu0.b32.cont [13/16] %v323, 128
      %404 = vxpose.xlu0.b32.cont [14/16] %v324, 128
      %405 = vxpose.xlu0.b32.cont [15/16] %v325, 128
      %406 = vxpose.xlu0.b32.end [16/16] %v326, 128
      %v407 = vpop.trf.xlu0
      %v408 = vpop.trf.xlu0
      %v409 = vpop.trf.xlu0
      %v410 = vpop.trf.xlu0
      %v411 = vpop.trf.xlu0
      %v412 = vpop.trf.xlu0
      %v413 = vpop.trf.xlu0
      %v414 = vpop.trf.xlu0
      %v415 = vpop.trf.xlu0
      %v416 = vpop.trf.xlu0
      %v417 = vpop.trf.xlu0
      %v418 = vpop.trf.xlu0
      %v419 = vpop.trf.xlu0
      %v420 = vpop.trf.xlu0
      %v421 = vpop.trf.xlu0
      %v422 = vpop.trf.xlu0
      %423 = vxpose.xlu0.b32.start [1/16] %v327, 128
      %424 = vxpose.xlu0.b32.cont [2/16] %v328, 128
      %425 = vxpose.xlu0.b32.cont [3/16] %v329, 128
      %426 = vxpose.xlu0.b32.cont [4/16] %v330, 128
      %427 = vxpose.xlu0.b32.cont [5/16] %v331, 128
      %428 = vxpose.xlu0.b32.cont [6/16] %v332, 128
      %429 = vxpose.xlu0.b32.cont [7/16] %v333, 128
      %430 = vxpose.xlu0.b32.cont [8/16] %v334, 128
      %431 = vxpose.xlu0.b32.cont [9/16] %v335, 128
      %432 = vxpose.xlu0.b32.cont [10/16] %v336, 128
      %433 = vxpose.xlu0.b32.cont [11/16] %v337, 128
      %434 = vxpose.xlu0.b32.cont [12/16] %v338, 128
      %435 = vxpose.xlu0.b32.cont [13/16] %v339, 128
      %436 = vxpose.xlu0.b32.cont [14/16] %v340, 128
      %437 = vxpose.xlu0.b32.cont [15/16] %v341, 128
      %438 = vxpose.xlu0.b32.end [16/16] %v342, 128
      %v439 = vpop.trf.xlu0
      %v440 = vpop.trf.xlu0
      %v441 = vpop.trf.xlu0
      %v442 = vpop.trf.xlu0
      %v443 = vpop.trf.xlu0
      %v444 = vpop.trf.xlu0
      %v445 = vpop.trf.xlu0
      %v446 = vpop.trf.xlu0
      %v447 = vpop.trf.xlu0
      %v448 = vpop.trf.xlu0
      %v449 = vpop.trf.xlu0
      %v450 = vpop.trf.xlu0
      %v451 = vpop.trf.xlu0
      %v452 = vpop.trf.xlu0
      %v453 = vpop.trf.xlu0
      %v454 = vpop.trf.xlu0
      %455 = vxpose.xlu0.b32.start [1/16] %v343, 128
      %456 = vxpose.xlu0.b32.cont [2/16] %v344, 128
      %457 = vxpose.xlu0.b32.cont [3/16] %v345, 128
      %458 = vxpose.xlu0.b32.cont [4/16] %v346, 128
      %459 = vxpose.xlu0.b32.cont [5/16] %v347, 128
      %460 = vxpose.xlu0.b32.cont [6/16] %v348, 128
      %461 = vxpose.xlu0.b32.cont [7/16] %v349, 128
      %462 = vxpose.xlu0.b32.cont [8/16] %v350, 128
      %463 = vxpose.xlu0.b32.cont [9/16] %v351, 128
      %464 = vxpose.xlu0.b32.cont [10/16] %v352, 128
      %465 = vxpose.xlu0.b32.cont [11/16] %v353, 128
      %466 = vxpose.xlu0.b32.cont [12/16] %v354, 128
      %467 = vxpose.xlu0.b32.cont [13/16] %v355, 128
      %468 = vxpose.xlu0.b32.cont [14/16] %v356, 128
      %469 = vxpose.xlu0.b32.cont [15/16] %v357, 128
      %470 = vxpose.xlu0.b32.end [16/16] %v358, 128
      %v471 = vpop.trf.xlu0
      %v472 = vpop.trf.xlu0
      %v473 = vpop.trf.xlu0
      %v474 = vpop.trf.xlu0
      %v475 = vpop.trf.xlu0
      %v476 = vpop.trf.xlu0
      %v477 = vpop.trf.xlu0
      %v478 = vpop.trf.xlu0
      %v479 = vpop.trf.xlu0
      %v480 = vpop.trf.xlu0
      %v481 = vpop.trf.xlu0
      %v482 = vpop.trf.xlu0
      %v483 = vpop.trf.xlu0
      %v484 = vpop.trf.xlu0
      %v485 = vpop.trf.xlu0
      %v486 = vpop.trf.xlu0
      %v487 = vadd.f32 %v375, %v376
      %v488 = vadd.f32 %v487, %v377
      %v489 = vadd.f32 %v488, %v378
      %v490 = vadd.f32 %v489, %v379
      %v491 = vadd.f32 %v490, %v380
      %v492 = vadd.f32 %v491, %v381
      %v493 = vadd.f32 %v492, %v382
      %v494 = vadd.f32 %v493, %v383
      %v495 = vadd.f32 %v494, %v384
      %v496 = vadd.f32 %v495, %v385
      %v497 = vadd.f32 %v496, %v386
      %v498 = vadd.f32 %v497, %v387
      %v499 = vadd.f32 %v498, %v388
      %v500 = vadd.f32 %v499, %v389
      %v501 = vadd.f32 %v500, %v390
      %v502 = vrot.slane %v501, 4
      %v503 = vadd.f32 %v501, %v502
      %v504 = vrot.slane %v503, 2
      %v505 = vadd.f32 %v503, %v504
      %v506 = vrot.slane %v505, 1
      %v507 = vadd.f32 %v505, %v506
      %v508 = vadd.f32 %v407, %v408
      %v509 = vadd.f32 %v508, %v409
      %v510 = vadd.f32 %v509, %v410
      %v511 = vadd.f32 %v510, %v411
      %v512 = vadd.f32 %v511, %v412
      %v513 = vadd.f32 %v512, %v413
      %v514 = vadd.f32 %v513, %v414
      %v515 = vadd.f32 %v514, %v415
      %v516 = vadd.f32 %v515, %v416
      %v517 = vadd.f32 %v516, %v417
      %v518 = vadd.f32 %v517, %v418
      %v519 = vadd.f32 %v518, %v419
      %v520 = vadd.f32 %v519, %v420
      %v521 = vadd.f32 %v520, %v421
      %v522 = vadd.f32 %v521, %v422
      %v523 = vrot.slane %v522, 4
      %v524 = vadd.f32 %v522, %v523
      %v525 = vrot.slane %v524, 2
      %v526 = vadd.f32 %v524, %v525
      %v527 = vrot.slane %v526, 1
      %v528 = vadd.f32 %v526, %v527
      %v529 = vadd.f32 %v439, %v440
      %v530 = vadd.f32 %v529, %v441
      %v531 = vadd.f32 %v530, %v442
      %v532 = vadd.f32 %v531, %v443
      %v533 = vadd.f32 %v532, %v444
      %v534 = vadd.f32 %v533, %v445
      %v535 = vadd.f32 %v534, %v446
      %v536 = vadd.f32 %v535, %v447
      %v537 = vadd.f32 %v536, %v448
      %v538 = vadd.f32 %v537, %v449
      %v539 = vadd.f32 %v538, %v450
      %v540 = vadd.f32 %v539, %v451
      %v541 = vadd.f32 %v540, %v452
      %v542 = vadd.f32 %v541, %v453
      %v543 = vadd.f32 %v542, %v454
      %v544 = vrot.slane %v543, 4
      %v545 = vadd.f32 %v543, %v544
      %v546 = vrot.slane %v545, 2
      %v547 = vadd.f32 %v545, %v546
      %v548 = vrot.slane %v547, 1
      %v549 = vadd.f32 %v547, %v548
      %v550 = vadd.f32 %v471, %v472
      %v551 = vadd.f32 %v550, %v473
      %v552 = vadd.f32 %v551, %v474
      %v553 = vadd.f32 %v552, %v475
      %v554 = vadd.f32 %v553, %v476
      %v555 = vadd.f32 %v554, %v477
      %v556 = vadd.f32 %v555, %v478
      %v557 = vadd.f32 %v556, %v479
      %v558 = vadd.f32 %v557, %v480
      %v559 = vadd.f32 %v558, %v481
      %v560 = vadd.f32 %v559, %v482
      %v561 = vadd.f32 %v560, %v483
      %v562 = vadd.f32 %v561, %v484
      %v563 = vadd.f32 %v562, %v485
      %v564 = vadd.f32 %v563, %v486
      %v565 = vrot.slane %v564, 4
      %v566 = vadd.f32 %v564, %v565
      %v567 = vrot.slane %v566, 2
      %v568 = vadd.f32 %v566, %v567
      %v569 = vrot.slane %v568, 1
      %v570 = vadd.f32 %v568, %v569
      %v575 = vcombine.low %v507, %v528
      %v576 = vcombine.low %v549, %v570
      %v578 = vunpack.c.l.s4 1966171168
      %v579 = vunpack.c.0.s8 %v578
      %v580 = vlaneseq
      %v581 = vshrl.u32 %v580, 7
      %v582 = vsub.s32 %v579, %v581
      %v583 = vrot.slane %v575, %v582
      %v585 = vunpack.c.l.s4 1966171168
      %v586 = vunpack.c.0.s8 %v585
      %v587 = vlaneseq
      %v588 = vshrl.u32 %v587, 7
      %v589 = vsub.s32 %v586, %v588
      %v590 = vrot.slane %v576, %v589
      %v591 = vcombine.low %v583, %v590
      %v593 = vunpack.c.l.s4 1966171168
      %v594 = vunpack.c.0.s8 %v593
      %v595 = vlaneseq
      %v596 = vshrl.u32 %v595, 7
      %v597 = vsub.s32 %v594, %v596
      %v598 = vrot.slane %v591, %v597
      %v600 = vlaneseq
      %vm601 = vcmp.ge.s32.totalorder %v600, 0
      %vm602 = vcmp.lt.s32.totalorder %v600, 512
      %vm603 = vmand %vm601, %vm602
      %604 = vst.msk [vmem:[%s165] sm:$0xf] %vm603, %v598
      %s605 = smul.u32 4, %s13
      %p606 = scmp.lt.s32.totalorder %s605, 7
      %s607 = scalar_select %p606, %s605, 7
      %s608 = scalar_lea.vmem %s2, %s607
      // Predicated region
      $region29: #{rating_prediction_forward.5} parent=27 // pred_check
        %p609 = pneg %p83
      $region30: #{rating_prediction_forward.5} parent=27 // pred_check_branch
        %611 = sbr.rel (%p609) target = $region32
      $region31: #{rating_prediction_forward.5} parent=27 // pred_region
        %s612 = smul.u32 4, %s13
      $region32: #{rating_prediction_forward.5} parent=27 // pred_fallthru
        _
    $region28: #{rating_prediction_forward.5} parent=5 // pred_fallthru
      _
    %p613 = scmp.le.s32.totalorder 2, %s8
    // Predicated region
    $region33: #{rating_prediction_forward.5} parent=5 // pred_check
      %p614 = pneg %p613
    $region34: #{rating_prediction_forward.5} parent=5 // pred_check_branch
      %616 = sbr.rel (%p614) target = $region36
    $region35: #{rating_prediction_forward.5} parent=5 // pred_region
      %s617 = ssub.s32 %s8, 2
      // Predicated region
      $region37: #{rating_prediction_forward.5} parent=35 // pred_check
        %p618 = pneg %p89
      $region38: #{rating_prediction_forward.5} parent=35 // pred_check_branch
        %620 = sbr.rel (%p618) target = $region40
      $region39: #{rating_prediction_forward.5} parent=35 // pred_region
        %s621 = smul.u32 4, %s14
        %p622 = scmp.lt.s32.totalorder %s621, 7
        %s623 = scalar_select %p622, %s621, 7
        %s624 = scalar_lea.vmem %s2, %s623
      $region40: #{rating_prediction_forward.5} parent=35 // pred_fallthru
        _
    $region36: #{rating_prediction_forward.5} parent=5 // pred_fallthru
      _
  $region6: #{rating_prediction_forward.5} parent=0 // loop_footer
    %s12 = sadd.s32 1, %s8
  $region7: #{rating_prediction_forward.5} parent=0 // loop_footer_branch
    %7 = sbr.rel target = $region3
  $region8: #{rating_prediction_forward.5} parent=0 // loop_exit
    _

</llo_original>
